<compile_context>
chip_gen: v7x
topology: tpu7x:2x2x1
jax: 0.10.0
libtpu: 0.0.40
codegen_flags: <defaults>
</compile_context>

<pallas_src>
import jax
import jax.numpy as jnp
from jax.experimental import pallas as pl
from jax.experimental.pallas import tpu as pltpu


def _round_up(n, m):
    return ((n + m - 1) // m) * m


_OUT_LANES = 128   # lane-dense output tile width; only lanes 0..5 are live


def _final_cnn_kernel(x_ref, w1_ref, w_ref, b_ref, out_ref):
    """One batch tile: (TM, 2W) cat(src,dst) -> (TM, 128) with [rot|trans] in lanes 0..5.

    x_ref  : (TM, 2W)     input tile, compute dtype (bf16 by default)
    w1_ref : (2W, Fp)     final1 weight (pre-transposed, zero-padded)
    w_ref  : (6, Fp, Fp)  packed weights: final2, final3, final4,
                          blockdiag(rot1,trans1), blockdiag(rot2,trans2),
                          blockdiag(rot3,trans3)          (compute dtype)
    b_ref  : (7, Fp)      packed biases, f32 (index 0 is final1's bias)
    out_ref: (TM, 128)    f32 output tile
    """
    cdt = w_ref.dtype            # compute dtype for MXU operands (bf16 or f32)

    def mm(a, w):
        return jnp.dot(a, w, preferred_element_type=jnp.float32)

    def bias(i):
        return b_ref[pl.ds(i, 1), :]          # (1, Fp) f32, broadcasts over rows

    x = x_ref[...].astype(cdt)
    # final1..final4 (dropout == identity in eval mode); accumulate/tanh in f32,
    # cast back down for the next MXU pass.
    h = jnp.tanh(mm(x, w1_ref[...]) + bias(0)).astype(cdt)
    h = jnp.tanh(mm(h, w_ref[0]) + bias(1)).astype(cdt)
    h = jnp.tanh(mm(h, w_ref[1]) + bias(2)).astype(cdt)
    h = jnp.tanh(mm(h, w_ref[2]) + bias(3)).astype(cdt)
    # fused rot|trans branch (block-diagonal weights keep the halves separate)
    h = jnp.tanh(mm(h, w_ref[3]) + bias(4)).astype(cdt)    # rot1 | trans1
    h = jnp.tanh(mm(h, w_ref[4]) + bias(5)).astype(cdt)    # rot2 | trans2 (lanes 0:10)
    y = mm(h, w_ref[5]) + bias(6)                          # rot3 | trans3 (lanes 0:6)

    # Lane-dense store of the full 128-lane tile; wrapper slices [:, :6].
    out_ref[...] = y[:, : out_ref.shape[1]].astype(out_ref.dtype)


def make_params(width, key, dtype=jnp.float32):
    """Deterministic synthetic parameters.  PyTorch Linear weight is (out, in);
    we store it pre-transposed as (in, out); bias is (out,)."""
    def linear(k, fan_in, fan_out):
        kw, kb = jax.random.split(k)
        bound = 1.0 / jnp.sqrt(jnp.asarray(fan_in, dtype))
        w_t = jax.random.uniform(kw, (fan_in, fan_out), dtype, -bound, bound)
        b = jax.random.uniform(kb, (fan_out,), dtype, -bound, bound)
        return w_t, b

    keys = jax.random.split(key, 10)
    W = width
    return {
        "final1": linear(keys[0], 2 * W, 2 * W),
        "final2": linear(keys[1], 2 * W, 2 * W),
        "final3": linear(keys[2], 2 * W, 2 * W),
        "final4": linear(keys[3], 2 * W, 2 * W),
        "rot1":   linear(keys[4], W, W),
        "rot2":   linear(keys[5], W, 5),
        "rot3":   linear(keys[6], 5, 3),
        "trans1": linear(keys[7], W, W),
        "trans2": linear(keys[8], W, 5),
        "trans3": linear(keys[9], 5, 3),
    }


def pack_params(params, width, compute_dtype=jnp.bfloat16):
    """Pack per-layer params into zero-padded, lane-dense slabs for the kernel.

    Weights are stored in `compute_dtype` (bf16 for the MXU); biases stay f32.
    Padded rows/cols/biases are exactly zero so padded lanes stay zero through
    every tanh layer (tanh(0) == 0) and the block-diagonal halves never mix.
    """
    W = width
    F = 2 * W
    Fp = _round_up(F, 128)                      # padded feature width (full lanes)

    def pad_w(w, rows, cols):
        return jnp.zeros((rows, cols), compute_dtype).at[
            : w.shape[0], : w.shape[1]].set(w.astype(compute_dtype))

    def block_diag(wa, wb):
        out = jnp.zeros((Fp, Fp), compute_dtype)
        out = out.at[: wa.shape[0], : wa.shape[1]].set(wa.astype(compute_dtype))
        out = out.at[wa.shape[0]: wa.shape[0] + wb.shape[0],
                     wa.shape[1]: wa.shape[1] + wb.shape[1]].set(
                         wb.astype(compute_dtype))
        return out

    def pad_b(b):
        return jnp.zeros((Fp,), jnp.float32).at[: b.shape[0]].set(
            b.astype(jnp.float32))

    w1, b1 = params["final1"]
    w2, b2 = params["final2"]
    w3, b3 = params["final3"]
    w4, b4 = params["final4"]
    wr1, br1 = params["rot1"]
    wr2, br2 = params["rot2"]
    wr3, br3 = params["rot3"]
    wt1, bt1 = params["trans1"]
    wt2, bt2 = params["trans2"]
    wt3, bt3 = params["trans3"]

    w1_full = pad_w(w1, F, Fp)                  # (2W, Fp): single K=2W matmul

    w_slab = jnp.stack([
        pad_w(w2, Fp, Fp),
        pad_w(w3, Fp, Fp),
        pad_w(w4, Fp, Fp),
        block_diag(wr1, wt1),                   # rot1 | trans1  (2W -> 2W)
        block_diag(wr2, wt2),                   # rot2 | trans2  (2W -> 10)
        block_diag(wr3, wt3),                   # rot3 | trans3  (10 -> 6)
    ])                                          # (6, Fp, Fp)

    b_slab = jnp.stack([
        pad_b(b1), pad_b(b2), pad_b(b3), pad_b(b4),
        pad_b(jnp.concatenate([br1, bt1])),
        pad_b(jnp.concatenate([br2, bt2])),
        pad_b(jnp.concatenate([br3, bt3])),
    ])                                          # (7, Fp) f32

    return {"w1": w1_full, "w_slab": w_slab, "b_slab": b_slab,
            "width": W, "fp": Fp, "compute_dtype": compute_dtype}


def final_cnn_forward(src_tmp, dst_tmp, packed, *, tm=128):
    """Forward pass.  Accepts (W,) vectors (original module signature, returns
    (6,)) or (B, W) batches (returns (B, 6)).

    tm: batch tile.  Sweep 256-1024 on single-TC v5e/v6e; on v7x keep the grid
    >= 2 tiles so the 'parallel' batch axis feeds both TensorCores.
    """
    single = src_tmp.ndim == 1
    src = src_tmp[None, :] if single else src_tmp
    dst = dst_tmp[None, :] if single else dst_tmp

    cdt = packed["compute_dtype"]
    # Wrapper-side concat (trivially fused XLA op) -> single first-layer matmul.
    x = jnp.concatenate([src, dst], axis=-1).astype(cdt)   # (B, 2W)
    B, F = x.shape
    assert F == 2 * packed["width"]
    Fp = packed["fp"]

    Bp = _round_up(B, tm)
    if Bp != B:
        x = jnp.pad(x, ((0, Bp - B), (0, 0)))

    resident = dict(pipeline_mode=pl.Buffered(1))   # constant-index params: single-buffer

    out = pl.pallas_call(
        _final_cnn_kernel,
        out_shape=jax.ShapeDtypeStruct((Bp, _OUT_LANES), jnp.float32),
        grid=(Bp // tm,),
        in_specs=[
            pl.BlockSpec((tm, F), lambda i: (i, 0)),                     # input batch tile
            pl.BlockSpec((F, Fp), lambda i: (0, 0), **resident),         # final1 weight (resident)
            pl.BlockSpec((6, Fp, Fp), lambda i: (0, 0, 0), **resident),  # packed weight slab (resident)
            pl.BlockSpec((7, Fp), lambda i: (0, 0), **resident),         # packed bias slab (resident)
        ],
        out_specs=pl.BlockSpec((tm, _OUT_LANES), lambda i: (i, 0)),
        compiler_params=pltpu.CompilerParams(
            dimension_semantics=("parallel",)),      # v7x: shard batch tiles over 2 TCs
    )(x, packed["w1"], packed["w_slab"], packed["b_slab"])

    out = out[:B, :6]
    return out[0] if single else out


def final_cnn_reference(src_tmp, dst_tmp, params, width):
    """Pure-JAX f32 reference (works for (W,) or (B, W) inputs)."""
    def lin(v, wb):
        w_t, b = wb
        return v @ w_t + b

    x = jnp.concatenate([src_tmp, dst_tmp], axis=-1).astype(jnp.float32)
    t = jnp.tanh(lin(x, params["final1"]))
    t = jnp.tanh(lin(t, params["final2"]))
    t = jnp.tanh(lin(t, params["final3"]))
    t = jnp.tanh(lin(t, params["final4"]))
    rot, trans = t[..., :width], t[..., width:]
    rot = jnp.tanh(lin(rot, params["rot1"]))
    rot = jnp.tanh(lin(rot, params["rot2"]))
    rot = lin(rot, params["rot3"])
    trans = jnp.tanh(lin(trans, params["trans1"]))
    trans = jnp.tanh(lin(trans, params["trans2"]))
    trans = lin(trans, params["trans3"])
    return jnp.concatenate([rot, trans], axis=-1)


if __name__ == "__main__":
    width = 32
    batch = 200          # not a multiple of TM=128 -> exercises batch padding; Bp=256 -> 2 tiles

    key = jax.random.PRNGKey(0)
    k_params, k_src, k_dst = jax.random.split(key, 3)

    params = make_params(width, k_params)
    src = jax.random.normal(k_src, (batch, width), jnp.float32)
    dst = jax.random.normal(k_dst, (batch, width), jnp.float32)

    ref = final_cnn_reference(src, dst, params, width)

    # f32-packed path: tight correctness check.
    packed_f32 = pack_params(params, width, compute_dtype=jnp.float32)
    out_f32 = jax.block_until_ready(final_cnn_forward(src, dst, packed_f32))
    assert out_f32.shape == (batch, 6)
    assert jnp.allclose(out_f32, ref, atol=5e-5, rtol=5e-5), \
        float(jnp.max(jnp.abs(out_f32 - ref)))

    # bf16-packed path (the optimized MXU-native path): loose tolerance.
    packed_bf16 = pack_params(params, width, compute_dtype=jnp.bfloat16)
    out_bf16 = jax.block_until_ready(final_cnn_forward(src, dst, packed_bf16))
    assert out_bf16.shape == (batch, 6)
    assert jnp.allclose(out_bf16, ref, atol=5e-2, rtol=5e-2), \
        float(jnp.max(jnp.abs(out_bf16 - ref)))

    # Single-sample path (original module signature: 1-D src/dst -> (6,)).
    out1 = jax.block_until_ready(final_cnn_forward(src[0], dst[0], packed_bf16))
    ref1 = final_cnn_reference(src[0], dst[0], params, width)
    assert out1.shape == (6,)
    assert jnp.allclose(out1, ref1, atol=5e-2, rtol=5e-2)

    print("KERNEL_OK")
</pallas_src>

<mosaic_0001>
module attributes {stable_mosaic.version = 11 : i64} {
  func.func @_final_cnn_kernel(%arg0: i32, %arg1: memref<128x64xf32, #tpu.memory_space<vmem>>, %arg2: memref<64x128xf32, #tpu.memory_space<vmem>>, %arg3: memref<6x128x128xf32, #tpu.memory_space<vmem>>, %arg4: memref<7x128xf32, #tpu.memory_space<vmem>>, %arg5: memref<128x128xf32, #tpu.memory_space<vmem>>) attributes {dimension_semantics = [#tpu.dimension_semantics<parallel>], iteration_bounds = array<i64: 2>, scalar_prefetch = 0 : i64, scratch_operands = 0 : i64, tpu.core_type = #tpu.core_type<tc>, window_params = [{transform_indices = @transform_0, window_bounds = array<i64: 128, 64>}, {pipeline_mode = #tpu.pipeline_mode<synchronous>, transform_indices = @transform_1, window_bounds = array<i64: 64, 128>}, {pipeline_mode = #tpu.pipeline_mode<synchronous>, transform_indices = @transform_2, window_bounds = array<i64: 6, 128, 128>}, {pipeline_mode = #tpu.pipeline_mode<synchronous>, transform_indices = @transform_3, window_bounds = array<i64: 7, 128>}, {transform_indices = @transform_4, window_bounds = array<i64: 128, 128>}]} {
    %c0 = arith.constant 0 : index
    %c0_0 = arith.constant 0 : index
    %0 = vector.load %arg1[%c0, %c0_0] : memref<128x64xf32, #tpu.memory_space<vmem>>, vector<128x64xf32>
    %c0_1 = arith.constant 0 : index
    %c0_2 = arith.constant 0 : index
    %1 = vector.load %arg2[%c0_1, %c0_2] : memref<64x128xf32, #tpu.memory_space<vmem>>, vector<64x128xf32>
    %cst = arith.constant dense<0.000000e+00> : vector<128x128xf32>
    %2 = tpu.matmul %0, %1, %cst {dimension_numbers = #tpu.dot_dimension_numbers<[1], [0], [0], [1], [0, 0, 1, 1], [], []>} : vector<128x64xf32>, vector<64x128xf32>, vector<128x128xf32> -> vector<128x128xf32>
    %c0_3 = arith.constant 0 : index
    %c0_4 = arith.constant 0 : index
    %3 = vector.load %arg4[%c0_3, %c0_4] : memref<7x128xf32, #tpu.memory_space<vmem>>, vector<1x128xf32>
    %4 = vector.broadcast %3 : vector<1x128xf32> to vector<128x128xf32>
    %5 = arith.addf %2, %4 : vector<128x128xf32>
    %6 = math.tanh %5 : vector<128x128xf32>
    %c0_5 = arith.constant 0 : index
    %c0_6 = arith.constant 0 : index
    %c0_7 = arith.constant 0 : index
    %7 = vector.load %arg3[%c0_5, %c0_6, %c0_7] : memref<6x128x128xf32, #tpu.memory_space<vmem>>, vector<1x128x128xf32>
    %8 = vector.shape_cast %7 : vector<1x128x128xf32> to vector<128x128xf32>
    %cst_8 = arith.constant dense<0.000000e+00> : vector<128x128xf32>
    %9 = tpu.matmul %6, %8, %cst_8 {dimension_numbers = #tpu.dot_dimension_numbers<[1], [0], [0], [1], [0, 0, 1, 1], [], []>} : vector<128x128xf32>, vector<128x128xf32>, vector<128x128xf32> -> vector<128x128xf32>
    %c1 = arith.constant 1 : index
    %c0_9 = arith.constant 0 : index
    %10 = vector.load %arg4[%c1, %c0_9] : memref<7x128xf32, #tpu.memory_space<vmem>>, vector<1x128xf32>
    %11 = vector.broadcast %10 : vector<1x128xf32> to vector<128x128xf32>
    %12 = arith.addf %9, %11 : vector<128x128xf32>
    %13 = math.tanh %12 : vector<128x128xf32>
    %c1_10 = arith.constant 1 : index
    %c0_11 = arith.constant 0 : index
    %c0_12 = arith.constant 0 : index
    %14 = vector.load %arg3[%c1_10, %c0_11, %c0_12] : memref<6x128x128xf32, #tpu.memory_space<vmem>>, vector<1x128x128xf32>
    %15 = vector.shape_cast %14 : vector<1x128x128xf32> to vector<128x128xf32>
    %cst_13 = arith.constant dense<0.000000e+00> : vector<128x128xf32>
    %16 = tpu.matmul %13, %15, %cst_13 {dimension_numbers = #tpu.dot_dimension_numbers<[1], [0], [0], [1], [0, 0, 1, 1], [], []>} : vector<128x128xf32>, vector<128x128xf32>, vector<128x128xf32> -> vector<128x128xf32>
    %c2 = arith.constant 2 : index
    %c0_14 = arith.constant 0 : index
    %17 = vector.load %arg4[%c2, %c0_14] : memref<7x128xf32, #tpu.memory_space<vmem>>, vector<1x128xf32>
    %18 = vector.broadcast %17 : vector<1x128xf32> to vector<128x128xf32>
    %19 = arith.addf %16, %18 : vector<128x128xf32>
    %20 = math.tanh %19 : vector<128x128xf32>
    %c2_15 = arith.constant 2 : index
    %c0_16 = arith.constant 0 : index
    %c0_17 = arith.constant 0 : index
    %21 = vector.load %arg3[%c2_15, %c0_16, %c0_17] : memref<6x128x128xf32, #tpu.memory_space<vmem>>, vector<1x128x128xf32>
    %22 = vector.shape_cast %21 : vector<1x128x128xf32> to vector<128x128xf32>
    %cst_18 = arith.constant dense<0.000000e+00> : vector<128x128xf32>
    %23 = tpu.matmul %20, %22, %cst_18 {dimension_numbers = #tpu.dot_dimension_numbers<[1], [0], [0], [1], [0, 0, 1, 1], [], []>} : vector<128x128xf32>, vector<128x128xf32>, vector<128x128xf32> -> vector<128x128xf32>
    %c3 = arith.constant 3 : index
    %c0_19 = arith.constant 0 : index
    %24 = vector.load %arg4[%c3, %c0_19] : memref<7x128xf32, #tpu.memory_space<vmem>>, vector<1x128xf32>
    %25 = vector.broadcast %24 : vector<1x128xf32> to vector<128x128xf32>
    %26 = arith.addf %23, %25 : vector<128x128xf32>
    %27 = math.tanh %26 : vector<128x128xf32>
    %c3_20 = arith.constant 3 : index
    %c0_21 = arith.constant 0 : index
    %c0_22 = arith.constant 0 : index
    %28 = vector.load %arg3[%c3_20, %c0_21, %c0_22] : memref<6x128x128xf32, #tpu.memory_space<vmem>>, vector<1x128x128xf32>
    %29 = vector.shape_cast %28 : vector<1x128x128xf32> to vector<128x128xf32>
    %cst_23 = arith.constant dense<0.000000e+00> : vector<128x128xf32>
    %30 = tpu.matmul %27, %29, %cst_23 {dimension_numbers = #tpu.dot_dimension_numbers<[1], [0], [0], [1], [0, 0, 1, 1], [], []>} : vector<128x128xf32>, vector<128x128xf32>, vector<128x128xf32> -> vector<128x128xf32>
    %c4 = arith.constant 4 : index
    %c0_24 = arith.constant 0 : index
    %31 = vector.load %arg4[%c4, %c0_24] : memref<7x128xf32, #tpu.memory_space<vmem>>, vector<1x128xf32>
    %32 = vector.broadcast %31 : vector<1x128xf32> to vector<128x128xf32>
    %33 = arith.addf %30, %32 : vector<128x128xf32>
    %34 = math.tanh %33 : vector<128x128xf32>
    %c4_25 = arith.constant 4 : index
    %c0_26 = arith.constant 0 : index
    %c0_27 = arith.constant 0 : index
    %35 = vector.load %arg3[%c4_25, %c0_26, %c0_27] : memref<6x128x128xf32, #tpu.memory_space<vmem>>, vector<1x128x128xf32>
    %36 = vector.shape_cast %35 : vector<1x128x128xf32> to vector<128x128xf32>
    %cst_28 = arith.constant dense<0.000000e+00> : vector<128x128xf32>
    %37 = tpu.matmul %34, %36, %cst_28 {dimension_numbers = #tpu.dot_dimension_numbers<[1], [0], [0], [1], [0, 0, 1, 1], [], []>} : vector<128x128xf32>, vector<128x128xf32>, vector<128x128xf32> -> vector<128x128xf32>
    %c5 = arith.constant 5 : index
    %c0_29 = arith.constant 0 : index
    %38 = vector.load %arg4[%c5, %c0_29] : memref<7x128xf32, #tpu.memory_space<vmem>>, vector<1x128xf32>
    %39 = vector.broadcast %38 : vector<1x128xf32> to vector<128x128xf32>
    %40 = arith.addf %37, %39 : vector<128x128xf32>
    %41 = math.tanh %40 : vector<128x128xf32>
    %c5_30 = arith.constant 5 : index
    %c0_31 = arith.constant 0 : index
    %c0_32 = arith.constant 0 : index
    %42 = vector.load %arg3[%c5_30, %c0_31, %c0_32] : memref<6x128x128xf32, #tpu.memory_space<vmem>>, vector<1x128x128xf32>
    %43 = vector.shape_cast %42 : vector<1x128x128xf32> to vector<128x128xf32>
    %cst_33 = arith.constant dense<0.000000e+00> : vector<128x128xf32>
    %44 = tpu.matmul %41, %43, %cst_33 {dimension_numbers = #tpu.dot_dimension_numbers<[1], [0], [0], [1], [0, 0, 1, 1], [], []>} : vector<128x128xf32>, vector<128x128xf32>, vector<128x128xf32> -> vector<128x128xf32>
    %c6 = arith.constant 6 : index
    %c0_34 = arith.constant 0 : index
    %45 = vector.load %arg4[%c6, %c0_34] : memref<7x128xf32, #tpu.memory_space<vmem>>, vector<1x128xf32>
    %46 = vector.broadcast %45 : vector<1x128xf32> to vector<128x128xf32>
    %47 = arith.addf %44, %46 : vector<128x128xf32>
    %c0_35 = arith.constant 0 : index
    %c0_36 = arith.constant 0 : index
    %48 = vector.load %arg5[%c0_35, %c0_36] : memref<128x128xf32, #tpu.memory_space<vmem>>, vector<128x128xf32>
    tpu.vector_store %arg5[%c0_35, %c0_36], %47 {strides = array<i32>} : memref<128x128xf32, #tpu.memory_space<vmem>>, vector<128x128xf32>,
    return
  }
  func.func @transform_0(%arg0: i32) -> (i32, i32) {
    %c0_i32 = arith.constant 0 : i32
    %c0_i32_0 = arith.constant 0 : i32
    return %arg0, %c0_i32 : i32, i32
  }
  func.func @transform_1(%arg0: i32) -> (i32, i32) {
    %c0_i32 = arith.constant 0 : i32
    %c0_i32_0 = arith.constant 0 : i32
    %c0_i32_1 = arith.constant 0 : i32
    return %c0_i32, %c0_i32_0 : i32, i32
  }
  func.func @transform_2(%arg0: i32) -> (i32, i32, i32) {
    %c0_i32 = arith.constant 0 : i32
    %c0_i32_0 = arith.constant 0 : i32
    %c0_i32_1 = arith.constant 0 : i32
    %c0_i32_2 = arith.constant 0 : i32
    return %c0_i32, %c0_i32_0, %c0_i32_1 : i32, i32, i32
  }
  func.func @transform_3(%arg0: i32) -> (i32, i32) {
    %c0_i32 = arith.constant 0 : i32
    %c0_i32_0 = arith.constant 0 : i32
    %c0_i32_1 = arith.constant 0 : i32
    return %c0_i32, %c0_i32_0 : i32, i32
  }
  func.func @transform_4(%arg0: i32) -> (i32, i32) {
    %c0_i32 = arith.constant 0 : i32
    %c0_i32_0 = arith.constant 0 : i32
    return %arg0, %c0_i32 : i32, i32
  }
}

</mosaic_0001>

<llo_original>
// kernel: tpu_custom_call.1
$region0: #{tpu_custom_call.1}
  #allocation0 [shape = 'u32[]', space=smem, size = 0x4, offset = 0x4, fixed_abs, tag = 'smem constant byte address 0x4 - core index']
  #allocation1 [shape = 'u32[144,128]{1,0:T(1,128)}', space=vmem, size = 0x12000, scoped, tag = 'internal scratch']
  %s0 = inlined_call_operand.vmem [shape: f32[256,64], index: 0, kind: input, shape index: {}]
  %s1 = inlined_call_operand.vmem [shape: f32[64,128], index: 1, kind: input, shape index: {}]
  %s2 = inlined_call_operand.hbm [shape: f32[6,128,128], index: 2, kind: input, shape index: {}]
  %s3 = inlined_call_operand.vmem [shape: f32[7,128], index: 3, kind: input, shape index: {}]
  %s4 = inlined_call_operand.hbm [shape: f32[256,128], index: 4, kind: output, shape index: {}]
  %s5 = sld [smem:[#allocation0]]
  $region53: #{tpu_custom_call.1} parent=0
    _
  %s7 = ssub.s32 1, %s5
  %s8 = scalar_select 0, %s7, %s5
  $region1: #{tpu_custom_call.1} parent=0
    #allocation2 [shape = 'u8[393216]{0}', space=vmem, size = 0x60000, scoped, tag = 'input window, operand 2, single buffered']
    #allocation3 [shape = 's32[2]{0}', space=sflag, size = 0x8, scoped, tag = 'scoped memory for tpu_custom_call.1']
    #allocation4 [shape = 's32[2]{0}', space=sflag, size = 0x8, scoped, tag = 'scoped memory for tpu_custom_call.1']
    #allocation5 [shape = 'u8[131072]{0}', space=vmem, size = 0x20000, scoped, tag = 'output window, operand 0']
    %9 = vsyncpa [#allocation3], 0
    %10 = vsyncpa [#allocation4], 0
    %s11 = scalar_lea.sflag [#allocation4], 1
    %12 = vsyncpa %s11, 0
    loop: start=0, step=1, limit=4
    $region2: #{tpu_custom_call.1} parent=1 // loop_pre_header
      _
    $region3: #{tpu_custom_call.1} parent=1 // loop_header
      %s14 = sphi 0, %s18
      %p15 = scmp.ge.s32.totalorder %s14, 4
      %s24 = sphi 0, %s26
      %s27 = sphi 0, %s24
      %s28 = sphi 0, %s27
      %s44 = sphi 0, %s28
      %s48 = sphi 0, %s48
      %s50 = sphi 0, %s48
      %s51 = sphi 0, %s50
      %s65 = sphi 0, %s51
      %s69 = sphi 0, %s69
      %s71 = sphi 0, %s69
      %s72 = sphi 0, %s71
      %s86 = sphi 0, %s72
      %s90 = sphi 0, %s90
      %s92 = sphi 0, %s90
      %s93 = sphi 0, %s92
      %s107 = sphi 0, %s93
      %s113 = sphi 0, %s115
      %s116 = sphi 0, %s113
      %s117 = sphi 0, %s116
      %s133 = sphi 0, %s117
    $region4: #{tpu_custom_call.1} parent=1 // loop_header_branch
      %17 = sbr.rel (%p15) target = $region8
    $region5: #{tpu_custom_call.1} parent=1 // loop_body
      %s19 = ssub.s32 %s14, 1
      %s20 = ssub.s32 %s14, 2
      %s21 = sadd.s32 %s14, 1
      %s22 = ssub.s32 %s14, %s21
      %p23 = scmp.eq.s32.totalorder %s22, 0
      %s25 = sadd.s32 %s24, 1
      %s26 = scalar_select %p23, %s24, %s25
      %p29 = pneg %p23
      %p30 = scmp.eq.s32.totalorder %s14, 1
      %p31 = por %p29, %p30
      %p32 = scmp.ne.s32.totalorder %s24, %s27
      %p33 = scmp.eq.s32.totalorder %s14, 0
      %p34 = por %p32, %p33
      %p35 = scmp.ne.s32.totalorder %s24, %s27
      %p36 = scmp.eq.s32.totalorder %s19, 1
      %p37 = por %p35, %p36
      %p38 = scmp.ne.s32.totalorder %s27, %s28
      %p39 = scmp.eq.s32.totalorder %s19, 0
      %p40 = por %p38, %p39
      %p41 = scmp.ne.s32.totalorder %s27, %s28
      %p42 = scmp.eq.s32.totalorder %s20, 1
      %p43 = por %p41, %p42
      %p45 = scmp.ne.s32.totalorder %s28, %s44
      %p46 = scmp.eq.s32.totalorder %s20, 0
      %p47 = por %p45, %p46
      %s49 = sadd.s32 %s48, 1
      %p52 = scmp.eq.s32.totalorder %s14, 1
      %p53 = scmp.ne.s32.totalorder %s48, %s50
      %p54 = scmp.eq.s32.totalorder %s14, 0
      %p55 = por %p53, %p54
      %p56 = scmp.ne.s32.totalorder %s48, %s50
      %p57 = scmp.eq.s32.totalorder %s19, 1
      %p58 = por %p56, %p57
      %p59 = scmp.ne.s32.totalorder %s50, %s51
      %p60 = scmp.eq.s32.totalorder %s19, 0
      %p61 = por %p59, %p60
      %p62 = scmp.ne.s32.totalorder %s50, %s51
      %p63 = scmp.eq.s32.totalorder %s20, 1
      %p64 = por %p62, %p63
      %p66 = scmp.ne.s32.totalorder %s51, %s65
      %p67 = scmp.eq.s32.totalorder %s20, 0
      %p68 = por %p66, %p67
      %s70 = sadd.s32 %s69, 1
      %p73 = scmp.eq.s32.totalorder %s14, 1
      %p74 = scmp.ne.s32.totalorder %s69, %s71
      %p75 = scmp.eq.s32.totalorder %s14, 0
      %p76 = por %p74, %p75
      %p77 = scmp.ne.s32.totalorder %s69, %s71
      %p78 = scmp.eq.s32.totalorder %s19, 1
      %p79 = por %p77, %p78
      %p80 = scmp.ne.s32.totalorder %s71, %s72
      %p81 = scmp.eq.s32.totalorder %s19, 0
      %p82 = por %p80, %p81
      %p83 = scmp.ne.s32.totalorder %s71, %s72
      %p84 = scmp.eq.s32.totalorder %s20, 1
      %p85 = por %p83, %p84
      %p87 = scmp.ne.s32.totalorder %s72, %s86
      %p88 = scmp.eq.s32.totalorder %s20, 0
      %p89 = por %p87, %p88
      %s91 = sadd.s32 %s90, 1
      %p94 = scmp.eq.s32.totalorder %s14, 1
      %p95 = scmp.ne.s32.totalorder %s90, %s92
      %p96 = scmp.eq.s32.totalorder %s14, 0
      %p97 = por %p95, %p96
      %p98 = scmp.ne.s32.totalorder %s90, %s92
      %p99 = scmp.eq.s32.totalorder %s19, 1
      %p100 = por %p98, %p99
      %p101 = scmp.ne.s32.totalorder %s92, %s93
      %p102 = scmp.eq.s32.totalorder %s19, 0
      %p103 = por %p101, %p102
      %p104 = scmp.ne.s32.totalorder %s92, %s93
      %p105 = scmp.eq.s32.totalorder %s20, 1
      %p106 = por %p104, %p105
      %p108 = scmp.ne.s32.totalorder %s93, %s107
      %p109 = scmp.eq.s32.totalorder %s20, 0
      %p110 = por %p108, %p109
      %s111 = ssub.s32 %s14, %s21
      %p112 = scmp.eq.s32.totalorder %s111, 0
      %s114 = sadd.s32 %s113, 1
      %s115 = scalar_select %p112, %s113, %s114
      %p118 = pneg %p112
      %p119 = scmp.eq.s32.totalorder %s14, 1
      %p120 = por %p118, %p119
      %p121 = scmp.ne.s32.totalorder %s113, %s116
      %p122 = scmp.eq.s32.totalorder %s14, 0
      %p123 = por %p121, %p122
      %p124 = scmp.ne.s32.totalorder %s113, %s116
      %p125 = scmp.eq.s32.totalorder %s19, 1
      %p126 = por %p124, %p125
      %p127 = scmp.ne.s32.totalorder %s116, %s117
      %p128 = scmp.eq.s32.totalorder %s19, 0
      %p129 = por %p127, %p128
      %p130 = scmp.ne.s32.totalorder %s116, %s117
      %p131 = scmp.eq.s32.totalorder %s20, 1
      %p132 = por %p130, %p131
      %p134 = scmp.ne.s32.totalorder %s117, %s133
      %p135 = scmp.eq.s32.totalorder %s20, 0
      %p136 = por %p134, %p135
      %p137 = scmp.le.s32.totalorder 1, %s14
      %p138 = scmp.lt.s32.totalorder %s14, 3
      %p139 = pnand %p137, %p138
      %p140 = pneg %p139
      // Predicated region
      $region9: #{tpu_custom_call.1} parent=5 // pred_check
        _
      $region10: #{tpu_custom_call.1} parent=5 // pred_check_branch
        %142 = sbr.rel (%p139) target = $region12
      $region11: #{tpu_custom_call.1} parent=5 // pred_region
        %s143 = ssub.s32 %s14, 1
        // Predicated region
        $region13: #{tpu_custom_call.1} parent=11 // pred_check
          %p144 = pneg %p61
        $region14: #{tpu_custom_call.1} parent=11 // pred_check_branch
          %146 = sbr.rel (%p144) target = $region16
        $region15: #{tpu_custom_call.1} parent=11 // pred_region
          _
        $region16: #{tpu_custom_call.1} parent=11 // pred_fallthru
          _
        // Predicated region
        $region17: #{tpu_custom_call.1} parent=11 // pred_check
          %p147 = pneg %p82
        $region18: #{tpu_custom_call.1} parent=11 // pred_check_branch
          %149 = sbr.rel (%p147) target = $region20
        $region19: #{tpu_custom_call.1} parent=11 // pred_region
          %s151 = ssub.s32 12288, 12288
          %152 = vsyncadd [#allocation3], %s151
          %s153 = sshll.u32 [#allocation2], 4
          %s154 = int_to_ptr.vmem [resolvable:$true] %s153
          %159 = dma.hbm_to_vmem [thread:$0]  %s2, 12288, %s154, [#allocation3], 128, 128, 8
        $region20: #{tpu_custom_call.1} parent=11 // pred_fallthru
          _
        // Predicated region
        $region21: #{tpu_custom_call.1} parent=11 // pred_check
          %p160 = pneg %p103
        $region22: #{tpu_custom_call.1} parent=11 // pred_check_branch
          %162 = sbr.rel (%p160) target = $region24
        $region23: #{tpu_custom_call.1} parent=11 // pred_region
          _
        $region24: #{tpu_custom_call.1} parent=11 // pred_fallthru
          _
      $region12: #{tpu_custom_call.1} parent=5 // pred_fallthru
        _
      %p163 = scmp.lt.s32.totalorder %s14, 2
      // Predicated region
      $region25: #{tpu_custom_call.1} parent=5 // pred_check
        %p164 = pneg %p163
      $region26: #{tpu_custom_call.1} parent=5 // pred_check_branch
        %166 = sbr.rel (%p164) target = $region28
      $region27: #{tpu_custom_call.1} parent=5 // pred_region
        // Predicated region
        $region29: #{tpu_custom_call.1} parent=27 // pred_check
          %p167 = pneg %p34
        $region30: #{tpu_custom_call.1} parent=27 // pred_check_branch
          %169 = sbr.rel (%p167) target = $region32
        $region31: #{tpu_custom_call.1} parent=27 // pred_region
          %s170 = smul.u32 16, %s14
          %p171 = scmp.lt.s32.totalorder %s170, 31
          %s172 = scalar_select %p171, %s170, 31
          %s173 = smul.addr %s172, 8
          %s174 = scalar_lea.vmem %s0, %s173
          %s175 = smul.u32 16, %s14
        $region32: #{tpu_custom_call.1} parent=27 // pred_fallthru
          _
      $region28: #{tpu_custom_call.1} parent=5 // pred_fallthru
        _
      %p176 = scmp.le.s32.totalorder 1, %s14
      %p177 = scmp.lt.s32.totalorder %s14, 3
      %p178 = pnand %p176, %p177
      %p179 = pneg %p178
      // Predicated region
      $region33: #{tpu_custom_call.1} parent=5 // pred_check
        _
      $region34: #{tpu_custom_call.1} parent=5 // pred_check_branch
        %181 = sbr.rel (%p178) target = $region36
      $region35: #{tpu_custom_call.1} parent=5 // pred_region
        %s182 = ssub.s32 %s14, 1
        // Predicated region
        $region37: #{tpu_custom_call.1} parent=35 // pred_check
          %p183 = pneg %p82
        $region38: #{tpu_custom_call.1} parent=35 // pred_check_branch
          %185 = sbr.rel (%p183) target = $region40
        $region39: #{tpu_custom_call.1} parent=35 // pred_region
          %186 = dma.done [#allocation3], 12288
        $region40: #{tpu_custom_call.1} parent=35 // pred_fallthru
          _
        %s187 = smul.u32 16, %s19
        %p188 = scmp.lt.s32.totalorder %s187, 31
        %s189 = scalar_select %p188, %s187, 31
        %s190 = smul.addr %s189, 8
        %s191 = scalar_lea.vmem %s0, %s190
        %p192 = pneg %p40
        %p193 = pneg %p37
        %p194 = pneg %p61
        %p195 = pneg %p58
        %p196 = pneg %p82
        %p197 = pneg %p79
        %p198 = pneg %p103
        %p199 = pneg %p100
        %p200 = pneg %p129
        %p201 = pneg %p126
        %s202 = sand.u32 %s116, 1
        %s203 = scalar_lea.sflag [#allocation4], %s202
        %s204 = sand.u32 %s116, 1
        %s205 = smul.addr %s204, 128
        %s206 = scalar_lea.vmem [#allocation5], %s205
        %s207 = smul.u32 16, %s19
        %p208 = scmp.lt.s32.totalorder %s207, 31
        %s209 = scalar_select %p208, %s207, 31
        %s210 = smul.addr %s209, 8
        %s211 = scalar_lea.vmem %s0, %s210
        %s212 = smul.u32 16, %s19
        %s213 = smul.u32 16, %s19
        %v214 = vld [vmem:[%s211] sm:$0xff]
        %v215 = vld [vmem:[%s211 + $0x8] sm:$0xff]
        %v216 = vld [vmem:[%s211 + $0x10] sm:$0xff]
        %v217 = vld [vmem:[%s211 + $0x18] sm:$0xff]
        %v218 = vld [vmem:[%s211 + $0x20] sm:$0xff]
        %v219 = vld [vmem:[%s211 + $0x28] sm:$0xff]
        %v220 = vld [vmem:[%s211 + $0x30] sm:$0xff]
        %v221 = vld [vmem:[%s211 + $0x38] sm:$0xff]
        %v222 = vld [vmem:[%s211 + $0x40] sm:$0xff]
        %v223 = vld [vmem:[%s211 + $0x48] sm:$0xff]
        %v224 = vld [vmem:[%s211 + $0x50] sm:$0xff]
        %v225 = vld [vmem:[%s211 + $0x58] sm:$0xff]
        %v226 = vld [vmem:[%s211 + $0x60] sm:$0xff]
        %v227 = vld [vmem:[%s211 + $0x68] sm:$0xff]
        %v228 = vld [vmem:[%s211 + $0x70] sm:$0xff]
        %v229 = vld [vmem:[%s211 + $0x78] sm:$0xff]
        %v230 = vld [vmem:[%s1] sm:$0xff]
        %v231 = vld [vmem:[%s1 + $0x8] sm:$0xff]
        %v232 = vld [vmem:[%s1 + $0x10] sm:$0xff]
        %v233 = vld [vmem:[%s1 + $0x18] sm:$0xff]
        %v234 = vld [vmem:[%s1 + $0x20] sm:$0xff]
        %v235 = vld [vmem:[%s1 + $0x28] sm:$0xff]
        %v236 = vld [vmem:[%s1 + $0x30] sm:$0xff]
        %v237 = vld [vmem:[%s1 + $0x38] sm:$0xff]
        %v238 = vld [vmem:[%s3] sm:$0x1]
        %v239 = vlaneseq
        %v240 = vshrl.u32 %v239, 7
        %v241 = vsub.s32 0, %v240
        %v242 = vrot.slane %v238, %v241
        %vm243 = vcmask 523264
        %v245 = vsel %vm243, %v214, 0
        %v248 = vsel %vm243, %v215, 0
        %v251 = vsel %vm243, %v216, 0
        %v254 = vsel %vm243, %v217, 0
        %v257 = vsel %vm243, %v218, 0
        %v260 = vsel %vm243, %v219, 0
        %v263 = vsel %vm243, %v220, 0
        %v266 = vsel %vm243, %v221, 0
        %v269 = vsel %vm243, %v222, 0
        %v272 = vsel %vm243, %v223, 0
        %v275 = vsel %vm243, %v224, 0
        %v278 = vsel %vm243, %v225, 0
        %v281 = vsel %vm243, %v226, 0
        %v284 = vsel %vm243, %v227, 0
        %v287 = vsel %vm243, %v228, 0
        %v290 = vsel %vm243, %v229, 0
        %292 = vmatprep.subr.mxu0 0.0
        %293 = vmatpush1.msra.mxu0 %v230
        %294 = vmatprep.subr.mxu0 0.0
        %295 = vmatpush1.msra.mxu0 %v231
        %296 = vmatprep.subr.mxu0 0.0
        %297 = vmatpush1.msra.mxu0 %v232
        %298 = vmatprep.subr.mxu0 0.0
        %299 = vmatpush1.msra.mxu0 %v233
        %300 = vmatprep.subr.mxu0 0.0
        %301 = vmatpush1.msra.mxu0 %v234
        %302 = vmatprep.subr.mxu0 0.0
        %303 = vmatpush1.msra.mxu0 %v235
        %304 = vmatprep.subr.mxu0 0.0
        %305 = vmatpush1.msra.mxu0 %v236
        %306 = vmatprep.subr.mxu0 0.0
        %307 = vmatpush1.msra.mxu0 %v237
        %308 = vmatprep.subr.mxu0 0.0
        %309 = vmatpush1.msra.mxu0 0.0
        %310 = vmatprep.subr.mxu0 0.0
        %311 = vmatpush1.msra.mxu0 0.0
        %312 = vmatprep.subr.mxu0 0.0
        %313 = vmatpush1.msra.mxu0 0.0
        %314 = vmatprep.subr.mxu0 0.0
        %315 = vmatpush1.msra.mxu0 0.0
        %316 = vmatprep.subr.mxu0 0.0
        %317 = vmatpush1.msra.mxu0 0.0
        %318 = vmatprep.subr.mxu0 0.0
        %319 = vmatpush1.msra.mxu0 0.0
        %320 = vmatprep.subr.mxu0 0.0
        %321 = vmatpush1.msra.mxu0 0.0
        %322 = vmatprep.subr.mxu0 0.0
        %323 = vmatpush1.msra.mxu0 0.0
        %324 = vmatprep.subr.mxu0 0.0
        %325 = vmatpush1.msra.mxu0 0.0
        %326 = vmatprep.subr.mxu0 0.0
        %327 = vmatpush1.msra.mxu0 0.0
        %328 = vmatprep.subr.mxu0 0.0
        %329 = vmatpush1.msra.mxu0 0.0
        %330 = vmatprep.subr.mxu0 0.0
        %331 = vmatpush1.msra.mxu0 0.0
        %332 = vmatprep.subr.mxu0 0.0
        %333 = vmatpush1.msra.mxu0 0.0
        %334 = vmatprep.subr.mxu0 0.0
        %335 = vmatpush1.msra.mxu0 0.0
        %336 = vmatprep.subr.mxu0 0.0
        %337 = vmatpush1.msra.mxu0 0.0
        %338 = vmatprep.subr.mxu0 0.0
        %339 = vmatpush1.msra.mxu0 0.0
        %340 = vmatprep.subr.mxu0 0.0
        %341 = vmatpush1.msra.mxu0 0.0
        %342 = vmatprep.subr.mxu0 0.0
        %343 = vmatpush1.msra.mxu0 0.0
        %344 = vmatprep.subr.mxu0 0.0
        %345 = vmatpush1.msra.mxu0 0.0
        %346 = vmatprep.subr.mxu0 0.0
        %347 = vmatpush1.msra.mxu0 0.0
        %348 = vmatprep.subr.mxu0 0.0
        %349 = vmatpush1.msra.mxu0 0.0
        %350 = vmatprep.subr.mxu0 0.0
        %351 = vmatpush1.msra.mxu0 0.0
        %352 = vmatprep.subr.mxu0 0.0
        %353 = vmatpush1.msra.mxu0 0.0
        %354 = vmatprep.subr.mxu0 0.0
        %355 = vmatpush1.msra.mxu0 0.0
        %356 = vmatprep.mubr.f32.mxu0 0.0
        %357 = vmatmul.mubr.f32.gmra.mrb[0].mxu0 %v245
        %v358 = vpop.f32.mrb[0].mxu0
        %v359 = vadd.f32 %v242, %v358
        %v360 = vpop.f32.mrb[0].mxu0
        %361 = vmatprep.mubr.f32.mxu0 0.0
        %362 = vmatmul.mubr.f32.gmra.mrb[0].mxu0 %v248
        %v363 = vpop.f32.mrb[0].mxu0
        %v364 = vadd.f32 %v242, %v363
        %v365 = vpop.f32.mrb[0].mxu0
        %366 = vmatprep.mubr.f32.mxu0 0.0
        %367 = vmatmul.mubr.f32.gmra.mrb[0].mxu0 %v251
        %v368 = vpop.f32.mrb[0].mxu0
        %v369 = vadd.f32 %v242, %v368
        %v370 = vpop.f32.mrb[0].mxu0
        %371 = vmatprep.mubr.f32.mxu0 0.0
        %372 = vmatmul.mubr.f32.gmra.mrb[0].mxu0 %v254
        %v373 = vpop.f32.mrb[0].mxu0
        %v374 = vadd.f32 %v242, %v373
        %v375 = vpop.f32.mrb[0].mxu0
        %376 = vmatprep.mubr.f32.mxu0 0.0
        %377 = vmatmul.mubr.f32.gmra.mrb[0].mxu0 %v257
        %v378 = vpop.f32.mrb[0].mxu0
        %v379 = vadd.f32 %v242, %v378
        %v380 = vpop.f32.mrb[0].mxu0
        %381 = vmatprep.mubr.f32.mxu0 0.0
        %382 = vmatmul.mubr.f32.gmra.mrb[0].mxu0 %v260
        %v383 = vpop.f32.mrb[0].mxu0
        %v384 = vadd.f32 %v242, %v383
        %v385 = vpop.f32.mrb[0].mxu0
        %386 = vmatprep.mubr.f32.mxu0 0.0
        %387 = vmatmul.mubr.f32.gmra.mrb[0].mxu0 %v263
        %v388 = vpop.f32.mrb[0].mxu0
        %v389 = vadd.f32 %v242, %v388
        %v390 = vpop.f32.mrb[0].mxu0
        %391 = vmatprep.mubr.f32.mxu0 0.0
        %392 = vmatmul.mubr.f32.gmra.mrb[0].mxu0 %v266
        %v393 = vpop.f32.mrb[0].mxu0
        %v394 = vadd.f32 %v242, %v393
        %v395 = vpop.f32.mrb[0].mxu0
        %396 = vmatprep.mubr.f32.mxu0 0.0
        %397 = vmatmul.mubr.f32.gmra.mrb[0].mxu0 %v269
        %v398 = vpop.f32.mrb[0].mxu0
        %v399 = vadd.f32 %v242, %v398
        %v400 = vpop.f32.mrb[0].mxu0
        %401 = vmatprep.mubr.f32.mxu0 0.0
        %402 = vmatmul.mubr.f32.gmra.mrb[0].mxu0 %v272
        %v403 = vpop.f32.mrb[0].mxu0
        %v404 = vadd.f32 %v242, %v403
        %v405 = vpop.f32.mrb[0].mxu0
        %406 = vmatprep.mubr.f32.mxu0 0.0
        %407 = vmatmul.mubr.f32.gmra.mrb[0].mxu0 %v275
        %v408 = vpop.f32.mrb[0].mxu0
        %v409 = vadd.f32 %v242, %v408
        %v410 = vpop.f32.mrb[0].mxu0
        %411 = vmatprep.mubr.f32.mxu0 0.0
        %412 = vmatmul.mubr.f32.gmra.mrb[0].mxu0 %v278
        %v413 = vpop.f32.mrb[0].mxu0
        %v414 = vadd.f32 %v242, %v413
        %v415 = vpop.f32.mrb[0].mxu0
        %416 = vmatprep.mubr.f32.mxu0 0.0
        %417 = vmatmul.mubr.f32.gmra.mrb[0].mxu0 %v281
        %v418 = vpop.f32.mrb[0].mxu0
        %v419 = vadd.f32 %v242, %v418
        %v420 = vpop.f32.mrb[0].mxu0
        %421 = vmatprep.mubr.f32.mxu0 0.0
        %422 = vmatmul.mubr.f32.gmra.mrb[0].mxu0 %v284
        %v423 = vpop.f32.mrb[0].mxu0
        %v424 = vadd.f32 %v242, %v423
        %v425 = vpop.f32.mrb[0].mxu0
        %426 = vmatprep.mubr.f32.mxu0 0.0
        %427 = vmatmul.mubr.f32.gmra.mrb[0].mxu0 %v287
        %v428 = vpop.f32.mrb[0].mxu0
        %v429 = vadd.f32 %v242, %v428
        %v430 = vpop.f32.mrb[0].mxu0
        %431 = vmatprep.mubr.f32.mxu0 0.0
        %432 = vmatmul.mubr.f32.gmra.mrb[0].mxu0 %v290
        %v433 = vpop.f32.mrb[0].mxu0
        %v434 = vadd.f32 %v242, %v433
        %v435 = vpop.f32.mrb[0].mxu0
        %436 = vdwg.mxu0
        %v437 = vtanh.pop %v359
        %v438 = vtanh.pop %v364
        %v439 = vtanh.pop %v369
        %v440 = vtanh.pop %v374
        %v441 = vtanh.pop %v379
        %v442 = vtanh.pop %v384
        %v443 = vtanh.pop %v389
        %v444 = vtanh.pop %v394
        %v445 = vtanh.pop %v399
        %v446 = vtanh.pop %v404
        %v447 = vtanh.pop %v409
        %v448 = vtanh.pop %v414
        %v449 = vtanh.pop %v419
        %v450 = vtanh.pop %v424
        %v451 = vtanh.pop %v429
        %v452 = vtanh.pop %v434
        %v453 = vld [vmem:[#allocation2] sm:$0xff]
        %v454 = vld [vmem:[#allocation2 + $0x8] sm:$0xff]
        %v455 = vld [vmem:[#allocation2 + $0x10] sm:$0xff]
        %v456 = vld [vmem:[#allocation2 + $0x18] sm:$0xff]
        %v457 = vld [vmem:[#allocation2 + $0x20] sm:$0xff]
        %v458 = vld [vmem:[#allocation2 + $0x28] sm:$0xff]
        %v459 = vld [vmem:[#allocation2 + $0x30] sm:$0xff]
        %v460 = vld [vmem:[#allocation2 + $0x38] sm:$0xff]
        %v461 = vld [vmem:[#allocation2 + $0x40] sm:$0xff]
        %v462 = vld [vmem:[#allocation2 + $0x48] sm:$0xff]
        %v463 = vld [vmem:[#allocation2 + $0x50] sm:$0xff]
        %v464 = vld [vmem:[#allocation2 + $0x58] sm:$0xff]
        %v465 = vld [vmem:[#allocation2 + $0x60] sm:$0xff]
        %v466 = vld [vmem:[#allocation2 + $0x68] sm:$0xff]
        %v467 = vld [vmem:[#allocation2 + $0x70] sm:$0xff]
        %v468 = vld [vmem:[#allocation2 + $0x78] sm:$0xff]
        %v469 = vld [vmem:[%s3 + $0x1] sm:$0x1]
        %v470 = vlaneseq
        %v471 = vshrl.u32 %v470, 7
        %v472 = vsub.s32 0, %v471
        %v473 = vrot.slane %v469, %v472
        %474 = vmatprep.subr.mxu0 0.0
        %475 = vmatpush1.msra.mxu0 %v453
        %476 = vmatprep.subr.mxu0 0.0
        %477 = vmatpush1.msra.mxu0 %v454
        %478 = vmatprep.subr.mxu0 0.0
        %479 = vmatpush1.msra.mxu0 %v455
        %480 = vmatprep.subr.mxu0 0.0
        %481 = vmatpush1.msra.mxu0 %v456
        %482 = vmatprep.subr.mxu0 0.0
        %483 = vmatpush1.msra.mxu0 %v457
        %484 = vmatprep.subr.mxu0 0.0
        %485 = vmatpush1.msra.mxu0 %v458
        %486 = vmatprep.subr.mxu0 0.0
        %487 = vmatpush1.msra.mxu0 %v459
        %488 = vmatprep.subr.mxu0 0.0
        %489 = vmatpush1.msra.mxu0 %v460
        %490 = vmatprep.subr.mxu0 0.0
        %491 = vmatpush1.msra.mxu0 %v461
        %492 = vmatprep.subr.mxu0 0.0
        %493 = vmatpush1.msra.mxu0 %v462
        %494 = vmatprep.subr.mxu0 0.0
        %495 = vmatpush1.msra.mxu0 %v463
        %496 = vmatprep.subr.mxu0 0.0
        %497 = vmatpush1.msra.mxu0 %v464
        %498 = vmatprep.subr.mxu0 0.0
        %499 = vmatpush1.msra.mxu0 %v465
        %500 = vmatprep.subr.mxu0 0.0
        %501 = vmatpush1.msra.mxu0 %v466
        %502 = vmatprep.subr.mxu0 0.0
        %503 = vmatpush1.msra.mxu0 %v467
        %504 = vmatprep.subr.mxu0 0.0
        %505 = vmatpush1.msra.mxu0 %v468
        %506 = vmatprep.subr.mxu0 0.0
        %507 = vmatpush1.msra.mxu0 0.0
        %508 = vmatprep.subr.mxu0 0.0
        %509 = vmatpush1.msra.mxu0 0.0
        %510 = vmatprep.subr.mxu0 0.0
        %511 = vmatpush1.msra.mxu0 0.0
        %512 = vmatprep.subr.mxu0 0.0
        %513 = vmatpush1.msra.mxu0 0.0
        %514 = vmatprep.subr.mxu0 0.0
        %515 = vmatpush1.msra.mxu0 0.0
        %516 = vmatprep.subr.mxu0 0.0
        %517 = vmatpush1.msra.mxu0 0.0
        %518 = vmatprep.subr.mxu0 0.0
        %519 = vmatpush1.msra.mxu0 0.0
        %520 = vmatprep.subr.mxu0 0.0
        %521 = vmatpush1.msra.mxu0 0.0
        %522 = vmatprep.subr.mxu0 0.0
        %523 = vmatpush1.msra.mxu0 0.0
        %524 = vmatprep.subr.mxu0 0.0
        %525 = vmatpush1.msra.mxu0 0.0
        %526 = vmatprep.subr.mxu0 0.0
        %527 = vmatpush1.msra.mxu0 0.0
        %528 = vmatprep.subr.mxu0 0.0
        %529 = vmatpush1.msra.mxu0 0.0
        %530 = vmatprep.subr.mxu0 0.0
        %531 = vmatpush1.msra.mxu0 0.0
        %532 = vmatprep.subr.mxu0 0.0
        %533 = vmatpush1.msra.mxu0 0.0
        %534 = vmatprep.subr.mxu0 0.0
        %535 = vmatpush1.msra.mxu0 0.0
        %536 = vmatprep.subr.mxu0 0.0
        %537 = vmatpush1.msra.mxu0 0.0
        %538 = vmatprep.mubr.f32.mxu0 0.0
        %539 = vmatmul.mubr.f32.gmra.mrb[0].mxu0 %v437
        %v540 = vpop.f32.mrb[0].mxu0
        %v541 = vadd.f32 %v473, %v540
        %v542 = vpop.f32.mrb[0].mxu0
        %543 = vmatprep.mubr.f32.mxu0 0.0
        %544 = vmatmul.mubr.f32.gmra.mrb[0].mxu0 %v438
        %v545 = vpop.f32.mrb[0].mxu0
        %v546 = vadd.f32 %v473, %v545
        %v547 = vpop.f32.mrb[0].mxu0
        %548 = vmatprep.mubr.f32.mxu0 0.0
        %549 = vmatmul.mubr.f32.gmra.mrb[0].mxu0 %v439
        %v550 = vpop.f32.mrb[0].mxu0
        %v551 = vadd.f32 %v473, %v550
        %v552 = vpop.f32.mrb[0].mxu0
        %553 = vmatprep.mubr.f32.mxu0 0.0
        %554 = vmatmul.mubr.f32.gmra.mrb[0].mxu0 %v440
        %v555 = vpop.f32.mrb[0].mxu0
        %v556 = vadd.f32 %v473, %v555
        %v557 = vpop.f32.mrb[0].mxu0
        %558 = vmatprep.mubr.f32.mxu0 0.0
        %559 = vmatmul.mubr.f32.gmra.mrb[0].mxu0 %v441
        %v560 = vpop.f32.mrb[0].mxu0
        %v561 = vadd.f32 %v473, %v560
        %v562 = vpop.f32.mrb[0].mxu0
        %563 = vmatprep.mubr.f32.mxu0 0.0
        %564 = vmatmul.mubr.f32.gmra.mrb[0].mxu0 %v442
        %v565 = vpop.f32.mrb[0].mxu0
        %v566 = vadd.f32 %v473, %v565
        %v567 = vpop.f32.mrb[0].mxu0
        %568 = vmatprep.mubr.f32.mxu0 0.0
        %569 = vmatmul.mubr.f32.gmra.mrb[0].mxu0 %v443
        %v570 = vpop.f32.mrb[0].mxu0
        %v571 = vadd.f32 %v473, %v570
        %v572 = vpop.f32.mrb[0].mxu0
        %573 = vmatprep.mubr.f32.mxu0 0.0
        %574 = vmatmul.mubr.f32.gmra.mrb[0].mxu0 %v444
        %v575 = vpop.f32.mrb[0].mxu0
        %v576 = vadd.f32 %v473, %v575
        %v577 = vpop.f32.mrb[0].mxu0
        %578 = vmatprep.mubr.f32.mxu0 0.0
        %579 = vmatmul.mubr.f32.gmra.mrb[0].mxu0 %v445
        %v580 = vpop.f32.mrb[0].mxu0
        %v581 = vadd.f32 %v473, %v580
        %v582 = vpop.f32.mrb[0].mxu0
        %583 = vmatprep.mubr.f32.mxu0 0.0
        %584 = vmatmul.mubr.f32.gmra.mrb[0].mxu0 %v446
        %v585 = vpop.f32.mrb[0].mxu0
        %v586 = vadd.f32 %v473, %v585
        %v587 = vpop.f32.mrb[0].mxu0
        %588 = vmatprep.mubr.f32.mxu0 0.0
        %589 = vmatmul.mubr.f32.gmra.mrb[0].mxu0 %v447
        %v590 = vpop.f32.mrb[0].mxu0
        %v591 = vadd.f32 %v473, %v590
        %v592 = vpop.f32.mrb[0].mxu0
        %593 = vmatprep.mubr.f32.mxu0 0.0
        %594 = vmatmul.mubr.f32.gmra.mrb[0].mxu0 %v448
        %v595 = vpop.f32.mrb[0].mxu0
        %v596 = vadd.f32 %v473, %v595
        %v597 = vpop.f32.mrb[0].mxu0
        %598 = vmatprep.mubr.f32.mxu0 0.0
        %599 = vmatmul.mubr.f32.gmra.mrb[0].mxu0 %v449
        %v600 = vpop.f32.mrb[0].mxu0
        %v601 = vadd.f32 %v473, %v600
        %v602 = vpop.f32.mrb[0].mxu0
        %603 = vmatprep.mubr.f32.mxu0 0.0
        %604 = vmatmul.mubr.f32.gmra.mrb[0].mxu0 %v450
        %v605 = vpop.f32.mrb[0].mxu0
        %v606 = vadd.f32 %v473, %v605
        %v607 = vpop.f32.mrb[0].mxu0
        %608 = vmatprep.mubr.f32.mxu0 0.0
        %609 = vmatmul.mubr.f32.gmra.mrb[0].mxu0 %v451
        %v610 = vpop.f32.mrb[0].mxu0
        %v611 = vadd.f32 %v473, %v610
        %v612 = vpop.f32.mrb[0].mxu0
        %613 = vmatprep.mubr.f32.mxu0 0.0
        %614 = vmatmul.mubr.f32.gmra.mrb[0].mxu0 %v452
        %v615 = vpop.f32.mrb[0].mxu0
        %v616 = vadd.f32 %v473, %v615
        %v617 = vpop.f32.mrb[0].mxu0
        %618 = vdwg.mxu0
        %v619 = vtanh.pop %v541
        %v620 = vtanh.pop %v546
        %v621 = vtanh.pop %v551
        %v622 = vtanh.pop %v556
        %v623 = vtanh.pop %v561
        %v624 = vtanh.pop %v566
        %v625 = vtanh.pop %v571
        %v626 = vtanh.pop %v576
        %v627 = vtanh.pop %v581
        %v628 = vtanh.pop %v586
        %v629 = vtanh.pop %v591
        %v630 = vtanh.pop %v596
        %v631 = vtanh.pop %v601
        %v632 = vtanh.pop %v606
        %v633 = vtanh.pop %v611
        %v634 = vtanh.pop %v616
        %s635 = scalar_lea.vmem [#allocation2], 128
        %v636 = vld [vmem:[%s635] sm:$0xff]
        %v637 = vld [vmem:[%s635 + $0x8] sm:$0xff]
        %v638 = vld [vmem:[%s635 + $0x10] sm:$0xff]
        %v639 = vld [vmem:[%s635 + $0x18] sm:$0xff]
        %v640 = vld [vmem:[%s635 + $0x20] sm:$0xff]
        %v641 = vld [vmem:[%s635 + $0x28] sm:$0xff]
        %v642 = vld [vmem:[%s635 + $0x30] sm:$0xff]
        %v643 = vld [vmem:[%s635 + $0x38] sm:$0xff]
        %v644 = vld [vmem:[%s635 + $0x40] sm:$0xff]
        %v645 = vld [vmem:[%s635 + $0x48] sm:$0xff]
        %v646 = vld [vmem:[%s635 + $0x50] sm:$0xff]
        %v647 = vld [vmem:[%s635 + $0x58] sm:$0xff]
        %v648 = vld [vmem:[%s635 + $0x60] sm:$0xff]
        %v649 = vld [vmem:[%s635 + $0x68] sm:$0xff]
        %v650 = vld [vmem:[%s635 + $0x70] sm:$0xff]
        %v651 = vld [vmem:[%s635 + $0x78] sm:$0xff]
        %v652 = vld [vmem:[%s3 + $0x2] sm:$0x1]
        %v653 = vlaneseq
        %v654 = vshrl.u32 %v653, 7
        %v655 = vsub.s32 0, %v654
        %v656 = vrot.slane %v652, %v655
        %657 = vmatprep.subr.mxu0 0.0
        %658 = vmatpush1.msra.mxu0 %v636
        %659 = vmatprep.subr.mxu0 0.0
        %660 = vmatpush1.msra.mxu0 %v637
        %661 = vmatprep.subr.mxu0 0.0
        %662 = vmatpush1.msra.mxu0 %v638
        %663 = vmatprep.subr.mxu0 0.0
        %664 = vmatpush1.msra.mxu0 %v639
        %665 = vmatprep.subr.mxu0 0.0
        %666 = vmatpush1.msra.mxu0 %v640
        %667 = vmatprep.subr.mxu0 0.0
        %668 = vmatpush1.msra.mxu0 %v641
        %669 = vmatprep.subr.mxu0 0.0
        %670 = vmatpush1.msra.mxu0 %v642
        %671 = vmatprep.subr.mxu0 0.0
        %672 = vmatpush1.msra.mxu0 %v643
        %673 = vmatprep.subr.mxu0 0.0
        %674 = vmatpush1.msra.mxu0 %v644
        %675 = vmatprep.subr.mxu0 0.0
        %676 = vmatpush1.msra.mxu0 %v645
        %677 = vmatprep.subr.mxu0 0.0
        %678 = vmatpush1.msra.mxu0 %v646
        %679 = vmatprep.subr.mxu0 0.0
        %680 = vmatpush1.msra.mxu0 %v647
        %681 = vmatprep.subr.mxu0 0.0
        %682 = vmatpush1.msra.mxu0 %v648
        %683 = vmatprep.subr.mxu0 0.0
        %684 = vmatpush1.msra.mxu0 %v649
        %685 = vmatprep.subr.mxu0 0.0
        %686 = vmatpush1.msra.mxu0 %v650
        %687 = vmatprep.subr.mxu0 0.0
        %688 = vmatpush1.msra.mxu0 %v651
        %689 = vmatprep.subr.mxu0 0.0
        %690 = vmatpush1.msra.mxu0 0.0
        %691 = vmatprep.subr.mxu0 0.0
        %692 = vmatpush1.msra.mxu0 0.0
        %693 = vmatprep.subr.mxu0 0.0
        %694 = vmatpush1.msra.mxu0 0.0
        %695 = vmatprep.subr.mxu0 0.0
        %696 = vmatpush1.msra.mxu0 0.0
        %697 = vmatprep.subr.mxu0 0.0
        %698 = vmatpush1.msra.mxu0 0.0
        %699 = vmatprep.subr.mxu0 0.0
        %700 = vmatpush1.msra.mxu0 0.0
        %701 = vmatprep.subr.mxu0 0.0
        %702 = vmatpush1.msra.mxu0 0.0
        %703 = vmatprep.subr.mxu0 0.0
        %704 = vmatpush1.msra.mxu0 0.0
        %705 = vmatprep.subr.mxu0 0.0
        %706 = vmatpush1.msra.mxu0 0.0
        %707 = vmatprep.subr.mxu0 0.0
        %708 = vmatpush1.msra.mxu0 0.0
        %709 = vmatprep.subr.mxu0 0.0
        %710 = vmatpush1.msra.mxu0 0.0
        %711 = vmatprep.subr.mxu0 0.0
        %712 = vmatpush1.msra.mxu0 0.0
        %713 = vmatprep.subr.mxu0 0.0
        %714 = vmatpush1.msra.mxu0 0.0
        %715 = vmatprep.subr.mxu0 0.0
        %716 = vmatpush1.msra.mxu0 0.0
        %717 = vmatprep.subr.mxu0 0.0
        %718 = vmatpush1.msra.mxu0 0.0
        %719 = vmatprep.subr.mxu0 0.0
        %720 = vmatpush1.msra.mxu0 0.0
        %721 = vmatprep.mubr.f32.mxu0 0.0
        %722 = vmatmul.mubr.f32.gmra.mrb[0].mxu0 %v619
        %v723 = vpop.f32.mrb[0].mxu0
        %v724 = vadd.f32 %v656, %v723
        %v725 = vpop.f32.mrb[0].mxu0
        %726 = vmatprep.mubr.f32.mxu0 0.0
        %727 = vmatmul.mubr.f32.gmra.mrb[0].mxu0 %v620
        %v728 = vpop.f32.mrb[0].mxu0
        %v729 = vadd.f32 %v656, %v728
        %v730 = vpop.f32.mrb[0].mxu0
        %731 = vmatprep.mubr.f32.mxu0 0.0
        %732 = vmatmul.mubr.f32.gmra.mrb[0].mxu0 %v621
        %v733 = vpop.f32.mrb[0].mxu0
        %v734 = vadd.f32 %v656, %v733
        %v735 = vpop.f32.mrb[0].mxu0
        %736 = vmatprep.mubr.f32.mxu0 0.0
        %737 = vmatmul.mubr.f32.gmra.mrb[0].mxu0 %v622
        %v738 = vpop.f32.mrb[0].mxu0
        %v739 = vadd.f32 %v656, %v738
        %v740 = vpop.f32.mrb[0].mxu0
        %741 = vmatprep.mubr.f32.mxu0 0.0
        %742 = vmatmul.mubr.f32.gmra.mrb[0].mxu0 %v623
        %v743 = vpop.f32.mrb[0].mxu0
        %v744 = vadd.f32 %v656, %v743
        %v745 = vpop.f32.mrb[0].mxu0
        %746 = vmatprep.mubr.f32.mxu0 0.0
        %747 = vmatmul.mubr.f32.gmra.mrb[0].mxu0 %v624
        %v748 = vpop.f32.mrb[0].mxu0
        %v749 = vadd.f32 %v656, %v748
        %v750 = vpop.f32.mrb[0].mxu0
        %751 = vmatprep.mubr.f32.mxu0 0.0
        %752 = vmatmul.mubr.f32.gmra.mrb[0].mxu0 %v625
        %v753 = vpop.f32.mrb[0].mxu0
        %v754 = vadd.f32 %v656, %v753
        %v755 = vpop.f32.mrb[0].mxu0
        %756 = vmatprep.mubr.f32.mxu0 0.0
        %757 = vmatmul.mubr.f32.gmra.mrb[0].mxu0 %v626
        %v758 = vpop.f32.mrb[0].mxu0
        %v759 = vadd.f32 %v656, %v758
        %v760 = vpop.f32.mrb[0].mxu0
        %761 = vmatprep.mubr.f32.mxu0 0.0
        %762 = vmatmul.mubr.f32.gmra.mrb[0].mxu0 %v627
        %v763 = vpop.f32.mrb[0].mxu0
        %v764 = vadd.f32 %v656, %v763
        %v765 = vpop.f32.mrb[0].mxu0
        %766 = vmatprep.mubr.f32.mxu0 0.0
        %767 = vmatmul.mubr.f32.gmra.mrb[0].mxu0 %v628
        %v768 = vpop.f32.mrb[0].mxu0
        %v769 = vadd.f32 %v656, %v768
        %v770 = vpop.f32.mrb[0].mxu0
        %771 = vmatprep.mubr.f32.mxu0 0.0
        %772 = vmatmul.mubr.f32.gmra.mrb[0].mxu0 %v629
        %v773 = vpop.f32.mrb[0].mxu0
        %v774 = vadd.f32 %v656, %v773
        %v775 = vpop.f32.mrb[0].mxu0
        %776 = vmatprep.mubr.f32.mxu0 0.0
        %777 = vmatmul.mubr.f32.gmra.mrb[0].mxu0 %v630
        %v778 = vpop.f32.mrb[0].mxu0
        %v779 = vadd.f32 %v656, %v778
        %v780 = vpop.f32.mrb[0].mxu0
        %781 = vmatprep.mubr.f32.mxu0 0.0
        %782 = vmatmul.mubr.f32.gmra.mrb[0].mxu0 %v631
        %v783 = vpop.f32.mrb[0].mxu0
        %v784 = vadd.f32 %v656, %v783
        %v785 = vpop.f32.mrb[0].mxu0
        %786 = vmatprep.mubr.f32.mxu0 0.0
        %787 = vmatmul.mubr.f32.gmra.mrb[0].mxu0 %v632
        %v788 = vpop.f32.mrb[0].mxu0
        %v789 = vadd.f32 %v656, %v788
        %v790 = vpop.f32.mrb[0].mxu0
        %791 = vmatprep.mubr.f32.mxu0 0.0
        %792 = vmatmul.mubr.f32.gmra.mrb[0].mxu0 %v633
        %v793 = vpop.f32.mrb[0].mxu0
        %v794 = vadd.f32 %v656, %v793
        %v795 = vpop.f32.mrb[0].mxu0
        %796 = vmatprep.mubr.f32.mxu0 0.0
        %797 = vmatmul.mubr.f32.gmra.mrb[0].mxu0 %v634
        %v798 = vpop.f32.mrb[0].mxu0
        %v799 = vadd.f32 %v656, %v798
        %v800 = vpop.f32.mrb[0].mxu0
        %801 = vdwg.mxu0
        %v802 = vtanh.pop %v724
        %v803 = vtanh.pop %v729
        %v804 = vtanh.pop %v734
        %v805 = vtanh.pop %v739
        %v806 = vtanh.pop %v744
        %v807 = vtanh.pop %v749
        %v808 = vtanh.pop %v754
        %v809 = vtanh.pop %v759
        %v810 = vtanh.pop %v764
        %v811 = vtanh.pop %v769
        %v812 = vtanh.pop %v774
        %v813 = vtanh.pop %v779
        %v814 = vtanh.pop %v784
        %v815 = vtanh.pop %v789
        %v816 = vtanh.pop %v794
        %v817 = vtanh.pop %v799
        %s818 = scalar_lea.vmem [#allocation2], 256
        %v819 = vld [vmem:[%s818] sm:$0xff]
        %v820 = vld [vmem:[%s818 + $0x8] sm:$0xff]
        %v821 = vld [vmem:[%s818 + $0x10] sm:$0xff]
        %v822 = vld [vmem:[%s818 + $0x18] sm:$0xff]
        %v823 = vld [vmem:[%s818 + $0x20] sm:$0xff]
        %v824 = vld [vmem:[%s818 + $0x28] sm:$0xff]
        %v825 = vld [vmem:[%s818 + $0x30] sm:$0xff]
        %v826 = vld [vmem:[%s818 + $0x38] sm:$0xff]
        %v827 = vld [vmem:[%s818 + $0x40] sm:$0xff]
        %v828 = vld [vmem:[%s818 + $0x48] sm:$0xff]
        %v829 = vld [vmem:[%s818 + $0x50] sm:$0xff]
        %v830 = vld [vmem:[%s818 + $0x58] sm:$0xff]
        %v831 = vld [vmem:[%s818 + $0x60] sm:$0xff]
        %v832 = vld [vmem:[%s818 + $0x68] sm:$0xff]
        %v833 = vld [vmem:[%s818 + $0x70] sm:$0xff]
        %v834 = vld [vmem:[%s818 + $0x78] sm:$0xff]
        %v835 = vld [vmem:[%s3 + $0x3] sm:$0x1]
        %v836 = vlaneseq
        %v837 = vshrl.u32 %v836, 7
        %v838 = vsub.s32 0, %v837
        %v839 = vrot.slane %v835, %v838
        %840 = vmatprep.subr.mxu0 0.0
        %841 = vmatpush1.msra.mxu0 %v819
        %842 = vmatprep.subr.mxu0 0.0
        %843 = vmatpush1.msra.mxu0 %v820
        %844 = vmatprep.subr.mxu0 0.0
        %845 = vmatpush1.msra.mxu0 %v821
        %846 = vmatprep.subr.mxu0 0.0
        %847 = vmatpush1.msra.mxu0 %v822
        %848 = vmatprep.subr.mxu0 0.0
        %849 = vmatpush1.msra.mxu0 %v823
        %850 = vmatprep.subr.mxu0 0.0
        %851 = vmatpush1.msra.mxu0 %v824
        %852 = vmatprep.subr.mxu0 0.0
        %853 = vmatpush1.msra.mxu0 %v825
        %854 = vmatprep.subr.mxu0 0.0
        %855 = vmatpush1.msra.mxu0 %v826
        %856 = vmatprep.subr.mxu0 0.0
        %857 = vmatpush1.msra.mxu0 %v827
        %858 = vmatprep.subr.mxu0 0.0
        %859 = vmatpush1.msra.mxu0 %v828
        %860 = vmatprep.subr.mxu0 0.0
        %861 = vmatpush1.msra.mxu0 %v829
        %862 = vmatprep.subr.mxu0 0.0
        %863 = vmatpush1.msra.mxu0 %v830
        %864 = vmatprep.subr.mxu0 0.0
        %865 = vmatpush1.msra.mxu0 %v831
        %866 = vmatprep.subr.mxu0 0.0
        %867 = vmatpush1.msra.mxu0 %v832
        %868 = vmatprep.subr.mxu0 0.0
        %869 = vmatpush1.msra.mxu0 %v833
        %870 = vmatprep.subr.mxu0 0.0
        %871 = vmatpush1.msra.mxu0 %v834
        %872 = vmatprep.subr.mxu0 0.0
        %873 = vmatpush1.msra.mxu0 0.0
        %874 = vmatprep.subr.mxu0 0.0
        %875 = vmatpush1.msra.mxu0 0.0
        %876 = vmatprep.subr.mxu0 0.0
        %877 = vmatpush1.msra.mxu0 0.0
        %878 = vmatprep.subr.mxu0 0.0
        %879 = vmatpush1.msra.mxu0 0.0
        %880 = vmatprep.subr.mxu0 0.0
        %881 = vmatpush1.msra.mxu0 0.0
        %882 = vmatprep.subr.mxu0 0.0
        %883 = vmatpush1.msra.mxu0 0.0
        %884 = vmatprep.subr.mxu0 0.0
        %885 = vmatpush1.msra.mxu0 0.0
        %886 = vmatprep.subr.mxu0 0.0
        %887 = vmatpush1.msra.mxu0 0.0
        %888 = vmatprep.subr.mxu0 0.0
        %889 = vmatpush1.msra.mxu0 0.0
        %890 = vmatprep.subr.mxu0 0.0
        %891 = vmatpush1.msra.mxu0 0.0
        %892 = vmatprep.subr.mxu0 0.0
        %893 = vmatpush1.msra.mxu0 0.0
        %894 = vmatprep.subr.mxu0 0.0
        %895 = vmatpush1.msra.mxu0 0.0
        %896 = vmatprep.subr.mxu0 0.0
        %897 = vmatpush1.msra.mxu0 0.0
        %898 = vmatprep.subr.mxu0 0.0
        %899 = vmatpush1.msra.mxu0 0.0
        %900 = vmatprep.subr.mxu0 0.0
        %901 = vmatpush1.msra.mxu0 0.0
        %902 = vmatprep.subr.mxu0 0.0
        %903 = vmatpush1.msra.mxu0 0.0
        %904 = vmatprep.mubr.f32.mxu0 0.0
        %905 = vmatmul.mubr.f32.gmra.mrb[0].mxu0 %v802
        %v906 = vpop.f32.mrb[0].mxu0
        %v907 = vadd.f32 %v839, %v906
        %v908 = vpop.f32.mrb[0].mxu0
        %909 = vmatprep.mubr.f32.mxu0 0.0
        %910 = vmatmul.mubr.f32.gmra.mrb[0].mxu0 %v803
        %v911 = vpop.f32.mrb[0].mxu0
        %v912 = vadd.f32 %v839, %v911
        %v913 = vpop.f32.mrb[0].mxu0
        %914 = vmatprep.mubr.f32.mxu0 0.0
        %915 = vmatmul.mubr.f32.gmra.mrb[0].mxu0 %v804
        %v916 = vpop.f32.mrb[0].mxu0
        %v917 = vadd.f32 %v839, %v916
        %v918 = vpop.f32.mrb[0].mxu0
        %919 = vmatprep.mubr.f32.mxu0 0.0
        %920 = vmatmul.mubr.f32.gmra.mrb[0].mxu0 %v805
        %v921 = vpop.f32.mrb[0].mxu0
        %v922 = vadd.f32 %v839, %v921
        %v923 = vpop.f32.mrb[0].mxu0
        %924 = vmatprep.mubr.f32.mxu0 0.0
        %925 = vmatmul.mubr.f32.gmra.mrb[0].mxu0 %v806
        %v926 = vpop.f32.mrb[0].mxu0
        %v927 = vadd.f32 %v839, %v926
        %v928 = vpop.f32.mrb[0].mxu0
        %929 = vmatprep.mubr.f32.mxu0 0.0
        %930 = vmatmul.mubr.f32.gmra.mrb[0].mxu0 %v807
        %v931 = vpop.f32.mrb[0].mxu0
        %v932 = vadd.f32 %v839, %v931
        %v933 = vpop.f32.mrb[0].mxu0
        %934 = vmatprep.mubr.f32.mxu0 0.0
        %935 = vmatmul.mubr.f32.gmra.mrb[0].mxu0 %v808
        %v936 = vpop.f32.mrb[0].mxu0
        %v937 = vadd.f32 %v839, %v936
        %v938 = vpop.f32.mrb[0].mxu0
        %939 = vmatprep.mubr.f32.mxu0 0.0
        %940 = vmatmul.mubr.f32.gmra.mrb[0].mxu0 %v809
        %v941 = vpop.f32.mrb[0].mxu0
        %v942 = vadd.f32 %v839, %v941
        %v943 = vpop.f32.mrb[0].mxu0
        %944 = vmatprep.mubr.f32.mxu0 0.0
        %945 = vmatmul.mubr.f32.gmra.mrb[0].mxu0 %v810
        %v946 = vpop.f32.mrb[0].mxu0
        %v947 = vadd.f32 %v839, %v946
        %v948 = vpop.f32.mrb[0].mxu0
        %949 = vmatprep.mubr.f32.mxu0 0.0
        %950 = vmatmul.mubr.f32.gmra.mrb[0].mxu0 %v811
        %v951 = vpop.f32.mrb[0].mxu0
        %v952 = vadd.f32 %v839, %v951
        %v953 = vpop.f32.mrb[0].mxu0
        %954 = vmatprep.mubr.f32.mxu0 0.0
        %955 = vmatmul.mubr.f32.gmra.mrb[0].mxu0 %v812
        %v956 = vpop.f32.mrb[0].mxu0
        %v957 = vadd.f32 %v839, %v956
        %v958 = vpop.f32.mrb[0].mxu0
        %959 = vmatprep.mubr.f32.mxu0 0.0
        %960 = vmatmul.mubr.f32.gmra.mrb[0].mxu0 %v813
        %v961 = vpop.f32.mrb[0].mxu0
        %v962 = vadd.f32 %v839, %v961
        %v963 = vpop.f32.mrb[0].mxu0
        %964 = vmatprep.mubr.f32.mxu0 0.0
        %965 = vmatmul.mubr.f32.gmra.mrb[0].mxu0 %v814
        %v966 = vpop.f32.mrb[0].mxu0
        %v967 = vadd.f32 %v839, %v966
        %v968 = vpop.f32.mrb[0].mxu0
        %969 = vmatprep.mubr.f32.mxu0 0.0
        %970 = vmatmul.mubr.f32.gmra.mrb[0].mxu0 %v815
        %v971 = vpop.f32.mrb[0].mxu0
        %v972 = vadd.f32 %v839, %v971
        %v973 = vpop.f32.mrb[0].mxu0
        %974 = vmatprep.mubr.f32.mxu0 0.0
        %975 = vmatmul.mubr.f32.gmra.mrb[0].mxu0 %v816
        %v976 = vpop.f32.mrb[0].mxu0
        %v977 = vadd.f32 %v839, %v976
        %v978 = vpop.f32.mrb[0].mxu0
        %979 = vmatprep.mubr.f32.mxu0 0.0
        %980 = vmatmul.mubr.f32.gmra.mrb[0].mxu0 %v817
        %v981 = vpop.f32.mrb[0].mxu0
        %v982 = vadd.f32 %v839, %v981
        %v983 = vpop.f32.mrb[0].mxu0
        %984 = vdwg.mxu0
        %v985 = vtanh.pop %v907
        %v986 = vtanh.pop %v912
        %v987 = vtanh.pop %v917
        %v988 = vtanh.pop %v922
        %v989 = vtanh.pop %v927
        %v990 = vtanh.pop %v932
        %v991 = vtanh.pop %v937
        %v992 = vtanh.pop %v942
        %v993 = vtanh.pop %v947
        %v994 = vtanh.pop %v952
        %v995 = vtanh.pop %v957
        %v996 = vtanh.pop %v962
        %v997 = vtanh.pop %v967
        %v998 = vtanh.pop %v972
        %v999 = vtanh.pop %v977
        %v1000 = vtanh.pop %v982
        %s1001 = scalar_lea.vmem [#allocation2], 384
        %v1002 = vld [vmem:[%s1001] sm:$0xff]
        %v1003 = vld [vmem:[%s1001 + $0x8] sm:$0xff]
        %v1004 = vld [vmem:[%s1001 + $0x10] sm:$0xff]
        %v1005 = vld [vmem:[%s1001 + $0x18] sm:$0xff]
        %v1006 = vld [vmem:[%s1001 + $0x20] sm:$0xff]
        %v1007 = vld [vmem:[%s1001 + $0x28] sm:$0xff]
        %v1008 = vld [vmem:[%s1001 + $0x30] sm:$0xff]
        %v1009 = vld [vmem:[%s1001 + $0x38] sm:$0xff]
        %v1010 = vld [vmem:[%s1001 + $0x40] sm:$0xff]
        %v1011 = vld [vmem:[%s1001 + $0x48] sm:$0xff]
        %v1012 = vld [vmem:[%s1001 + $0x50] sm:$0xff]
        %v1013 = vld [vmem:[%s1001 + $0x58] sm:$0xff]
        %v1014 = vld [vmem:[%s1001 + $0x60] sm:$0xff]
        %v1015 = vld [vmem:[%s1001 + $0x68] sm:$0xff]
        %v1016 = vld [vmem:[%s1001 + $0x70] sm:$0xff]
        %v1017 = vld [vmem:[%s1001 + $0x78] sm:$0xff]
        %v1018 = vld [vmem:[%s3 + $0x4] sm:$0x1]
        %v1019 = vlaneseq
        %v1020 = vshrl.u32 %v1019, 7
        %v1021 = vsub.s32 0, %v1020
        %v1022 = vrot.slane %v1018, %v1021
        %1023 = vmatprep.subr.mxu0 0.0
        %1024 = vmatpush1.msra.mxu0 %v1002
        %1025 = vmatprep.subr.mxu0 0.0
        %1026 = vmatpush1.msra.mxu0 %v1003
        %1027 = vmatprep.subr.mxu0 0.0
        %1028 = vmatpush1.msra.mxu0 %v1004
        %1029 = vmatprep.subr.mxu0 0.0
        %1030 = vmatpush1.msra.mxu0 %v1005
        %1031 = vmatprep.subr.mxu0 0.0
        %1032 = vmatpush1.msra.mxu0 %v1006
        %1033 = vmatprep.subr.mxu0 0.0
        %1034 = vmatpush1.msra.mxu0 %v1007
        %1035 = vmatprep.subr.mxu0 0.0
        %1036 = vmatpush1.msra.mxu0 %v1008
        %1037 = vmatprep.subr.mxu0 0.0
        %1038 = vmatpush1.msra.mxu0 %v1009
        %1039 = vmatprep.subr.mxu0 0.0
        %1040 = vmatpush1.msra.mxu0 %v1010
        %1041 = vmatprep.subr.mxu0 0.0
        %1042 = vmatpush1.msra.mxu0 %v1011
        %1043 = vmatprep.subr.mxu0 0.0
        %1044 = vmatpush1.msra.mxu0 %v1012
        %1045 = vmatprep.subr.mxu0 0.0
        %1046 = vmatpush1.msra.mxu0 %v1013
        %1047 = vmatprep.subr.mxu0 0.0
        %1048 = vmatpush1.msra.mxu0 %v1014
        %1049 = vmatprep.subr.mxu0 0.0
        %1050 = vmatpush1.msra.mxu0 %v1015
        %1051 = vmatprep.subr.mxu0 0.0
        %1052 = vmatpush1.msra.mxu0 %v1016
        %1053 = vmatprep.subr.mxu0 0.0
        %1054 = vmatpush1.msra.mxu0 %v1017
        %1055 = vmatprep.subr.mxu0 0.0
        %1056 = vmatpush1.msra.mxu0 0.0
        %1057 = vmatprep.subr.mxu0 0.0
        %1058 = vmatpush1.msra.mxu0 0.0
        %1059 = vmatprep.subr.mxu0 0.0
        %1060 = vmatpush1.msra.mxu0 0.0
        %1061 = vmatprep.subr.mxu0 0.0
        %1062 = vmatpush1.msra.mxu0 0.0
        %1063 = vmatprep.subr.mxu0 0.0
        %1064 = vmatpush1.msra.mxu0 0.0
        %1065 = vmatprep.subr.mxu0 0.0
        %1066 = vmatpush1.msra.mxu0 0.0
        %1067 = vmatprep.subr.mxu0 0.0
        %1068 = vmatpush1.msra.mxu0 0.0
        %1069 = vmatprep.subr.mxu0 0.0
        %1070 = vmatpush1.msra.mxu0 0.0
        %1071 = vmatprep.subr.mxu0 0.0
        %1072 = vmatpush1.msra.mxu0 0.0
        %1073 = vmatprep.subr.mxu0 0.0
        %1074 = vmatpush1.msra.mxu0 0.0
        %1075 = vmatprep.subr.mxu0 0.0
        %1076 = vmatpush1.msra.mxu0 0.0
        %1077 = vmatprep.subr.mxu0 0.0
        %1078 = vmatpush1.msra.mxu0 0.0
        %1079 = vmatprep.subr.mxu0 0.0
        %1080 = vmatpush1.msra.mxu0 0.0
        %1081 = vmatprep.subr.mxu0 0.0
        %1082 = vmatpush1.msra.mxu0 0.0
        %1083 = vmatprep.subr.mxu0 0.0
        %1084 = vmatpush1.msra.mxu0 0.0
        %1085 = vmatprep.subr.mxu0 0.0
        %1086 = vmatpush1.msra.mxu0 0.0
        %1087 = vmatprep.mubr.f32.mxu0 0.0
        %1088 = vmatmul.mubr.f32.gmra.mrb[0].mxu0 %v985
        %v1089 = vpop.f32.mrb[0].mxu0
        %v1090 = vadd.f32 %v1022, %v1089
        %v1091 = vpop.f32.mrb[0].mxu0
        %1092 = vmatprep.mubr.f32.mxu0 0.0
        %1093 = vmatmul.mubr.f32.gmra.mrb[0].mxu0 %v986
        %v1094 = vpop.f32.mrb[0].mxu0
        %v1095 = vadd.f32 %v1022, %v1094
        %v1096 = vpop.f32.mrb[0].mxu0
        %1097 = vmatprep.mubr.f32.mxu0 0.0
        %1098 = vmatmul.mubr.f32.gmra.mrb[0].mxu0 %v987
        %v1099 = vpop.f32.mrb[0].mxu0
        %v1100 = vadd.f32 %v1022, %v1099
        %v1101 = vpop.f32.mrb[0].mxu0
        %1102 = vmatprep.mubr.f32.mxu0 0.0
        %1103 = vmatmul.mubr.f32.gmra.mrb[0].mxu0 %v988
        %v1104 = vpop.f32.mrb[0].mxu0
        %v1105 = vadd.f32 %v1022, %v1104
        %v1106 = vpop.f32.mrb[0].mxu0
        %1107 = vmatprep.mubr.f32.mxu0 0.0
        %1108 = vmatmul.mubr.f32.gmra.mrb[0].mxu0 %v989
        %v1109 = vpop.f32.mrb[0].mxu0
        %v1110 = vadd.f32 %v1022, %v1109
        %v1111 = vpop.f32.mrb[0].mxu0
        %1112 = vmatprep.mubr.f32.mxu0 0.0
        %1113 = vmatmul.mubr.f32.gmra.mrb[0].mxu0 %v990
        %v1114 = vpop.f32.mrb[0].mxu0
        %v1115 = vadd.f32 %v1022, %v1114
        %v1116 = vpop.f32.mrb[0].mxu0
        %1117 = vmatprep.mubr.f32.mxu0 0.0
        %1118 = vmatmul.mubr.f32.gmra.mrb[0].mxu0 %v991
        %v1119 = vpop.f32.mrb[0].mxu0
        %v1120 = vadd.f32 %v1022, %v1119
        %v1121 = vpop.f32.mrb[0].mxu0
        %1122 = vmatprep.mubr.f32.mxu0 0.0
        %1123 = vmatmul.mubr.f32.gmra.mrb[0].mxu0 %v992
        %v1124 = vpop.f32.mrb[0].mxu0
        %v1125 = vadd.f32 %v1022, %v1124
        %v1126 = vpop.f32.mrb[0].mxu0
        %1127 = vmatprep.mubr.f32.mxu0 0.0
        %1128 = vmatmul.mubr.f32.gmra.mrb[0].mxu0 %v993
        %v1129 = vpop.f32.mrb[0].mxu0
        %v1130 = vadd.f32 %v1022, %v1129
        %v1131 = vpop.f32.mrb[0].mxu0
        %1132 = vmatprep.mubr.f32.mxu0 0.0
        %1133 = vmatmul.mubr.f32.gmra.mrb[0].mxu0 %v994
        %v1134 = vpop.f32.mrb[0].mxu0
        %v1135 = vadd.f32 %v1022, %v1134
        %v1136 = vpop.f32.mrb[0].mxu0
        %1137 = vmatprep.mubr.f32.mxu0 0.0
        %1138 = vmatmul.mubr.f32.gmra.mrb[0].mxu0 %v995
        %v1139 = vpop.f32.mrb[0].mxu0
        %v1140 = vadd.f32 %v1022, %v1139
        %v1141 = vpop.f32.mrb[0].mxu0
        %1142 = vmatprep.mubr.f32.mxu0 0.0
        %1143 = vmatmul.mubr.f32.gmra.mrb[0].mxu0 %v996
        %v1144 = vpop.f32.mrb[0].mxu0
        %v1145 = vadd.f32 %v1022, %v1144
        %v1146 = vpop.f32.mrb[0].mxu0
        %1147 = vmatprep.mubr.f32.mxu0 0.0
        %1148 = vmatmul.mubr.f32.gmra.mrb[0].mxu0 %v997
        %v1149 = vpop.f32.mrb[0].mxu0
        %v1150 = vadd.f32 %v1022, %v1149
        %v1151 = vpop.f32.mrb[0].mxu0
        %1152 = vmatprep.mubr.f32.mxu0 0.0
        %1153 = vmatmul.mubr.f32.gmra.mrb[0].mxu0 %v998
        %v1154 = vpop.f32.mrb[0].mxu0
        %v1155 = vadd.f32 %v1022, %v1154
        %v1156 = vpop.f32.mrb[0].mxu0
        %1157 = vmatprep.mubr.f32.mxu0 0.0
        %1158 = vmatmul.mubr.f32.gmra.mrb[0].mxu0 %v999
        %v1159 = vpop.f32.mrb[0].mxu0
        %v1160 = vadd.f32 %v1022, %v1159
        %v1161 = vpop.f32.mrb[0].mxu0
        %1162 = vmatprep.mubr.f32.mxu0 0.0
        %1163 = vmatmul.mubr.f32.gmra.mrb[0].mxu0 %v1000
        %v1164 = vpop.f32.mrb[0].mxu0
        %v1165 = vadd.f32 %v1022, %v1164
        %v1166 = vpop.f32.mrb[0].mxu0
        %1167 = vdwg.mxu0
        %v1168 = vtanh.pop %v1090
        %v1169 = vtanh.pop %v1095
        %v1170 = vtanh.pop %v1100
        %v1171 = vtanh.pop %v1105
        %v1172 = vtanh.pop %v1110
        %v1173 = vtanh.pop %v1115
        %v1174 = vtanh.pop %v1120
        %v1175 = vtanh.pop %v1125
        %v1176 = vtanh.pop %v1130
        %v1177 = vtanh.pop %v1135
        %v1178 = vtanh.pop %v1140
        %v1179 = vtanh.pop %v1145
        %v1180 = vtanh.pop %v1150
        %v1181 = vtanh.pop %v1155
        %v1182 = vtanh.pop %v1160
        %v1183 = vtanh.pop %v1165
        %s1184 = scalar_lea.vmem [#allocation2], 512
        %v1185 = vld [vmem:[%s1184] sm:$0xff]
        %v1186 = vld [vmem:[%s1184 + $0x8] sm:$0xff]
        %v1187 = vld [vmem:[%s1184 + $0x10] sm:$0xff]
        %v1188 = vld [vmem:[%s1184 + $0x18] sm:$0xff]
        %v1189 = vld [vmem:[%s1184 + $0x20] sm:$0xff]
        %v1190 = vld [vmem:[%s1184 + $0x28] sm:$0xff]
        %v1191 = vld [vmem:[%s1184 + $0x30] sm:$0xff]
        %v1192 = vld [vmem:[%s1184 + $0x38] sm:$0xff]
        %v1193 = vld [vmem:[%s1184 + $0x40] sm:$0xff]
        %v1194 = vld [vmem:[%s1184 + $0x48] sm:$0xff]
        %v1195 = vld [vmem:[%s1184 + $0x50] sm:$0xff]
        %v1196 = vld [vmem:[%s1184 + $0x58] sm:$0xff]
        %v1197 = vld [vmem:[%s1184 + $0x60] sm:$0xff]
        %v1198 = vld [vmem:[%s1184 + $0x68] sm:$0xff]
        %v1199 = vld [vmem:[%s1184 + $0x70] sm:$0xff]
        %v1200 = vld [vmem:[%s1184 + $0x78] sm:$0xff]
        %v1201 = vld [vmem:[%s3 + $0x5] sm:$0x1]
        %v1202 = vlaneseq
        %v1203 = vshrl.u32 %v1202, 7
        %v1204 = vsub.s32 0, %v1203
        %v1205 = vrot.slane %v1201, %v1204
        %1206 = vmatprep.subr.mxu0 0.0
        %1207 = vmatpush1.msra.mxu0 %v1185
        %1208 = vmatprep.subr.mxu0 0.0
        %1209 = vmatpush1.msra.mxu0 %v1186
        %1210 = vmatprep.subr.mxu0 0.0
        %1211 = vmatpush1.msra.mxu0 %v1187
        %1212 = vmatprep.subr.mxu0 0.0
        %1213 = vmatpush1.msra.mxu0 %v1188
        %1214 = vmatprep.subr.mxu0 0.0
        %1215 = vmatpush1.msra.mxu0 %v1189
        %1216 = vmatprep.subr.mxu0 0.0
        %1217 = vmatpush1.msra.mxu0 %v1190
        %1218 = vmatprep.subr.mxu0 0.0
        %1219 = vmatpush1.msra.mxu0 %v1191
        %1220 = vmatprep.subr.mxu0 0.0
        %1221 = vmatpush1.msra.mxu0 %v1192
        %1222 = vmatprep.subr.mxu0 0.0
        %1223 = vmatpush1.msra.mxu0 %v1193
        %1224 = vmatprep.subr.mxu0 0.0
        %1225 = vmatpush1.msra.mxu0 %v1194
        %1226 = vmatprep.subr.mxu0 0.0
        %1227 = vmatpush1.msra.mxu0 %v1195
        %1228 = vmatprep.subr.mxu0 0.0
        %1229 = vmatpush1.msra.mxu0 %v1196
        %1230 = vmatprep.subr.mxu0 0.0
        %1231 = vmatpush1.msra.mxu0 %v1197
        %1232 = vmatprep.subr.mxu0 0.0
        %1233 = vmatpush1.msra.mxu0 %v1198
        %1234 = vmatprep.subr.mxu0 0.0
        %1235 = vmatpush1.msra.mxu0 %v1199
        %1236 = vmatprep.subr.mxu0 0.0
        %1237 = vmatpush1.msra.mxu0 %v1200
        %1238 = vmatprep.subr.mxu0 0.0
        %1239 = vmatpush1.msra.mxu0 0.0
        %1240 = vmatprep.subr.mxu0 0.0
        %1241 = vmatpush1.msra.mxu0 0.0
        %1242 = vmatprep.subr.mxu0 0.0
        %1243 = vmatpush1.msra.mxu0 0.0
        %1244 = vmatprep.subr.mxu0 0.0
        %1245 = vmatpush1.msra.mxu0 0.0
        %1246 = vmatprep.subr.mxu0 0.0
        %1247 = vmatpush1.msra.mxu0 0.0
        %1248 = vmatprep.subr.mxu0 0.0
        %1249 = vmatpush1.msra.mxu0 0.0
        %1250 = vmatprep.subr.mxu0 0.0
        %1251 = vmatpush1.msra.mxu0 0.0
        %1252 = vmatprep.subr.mxu0 0.0
        %1253 = vmatpush1.msra.mxu0 0.0
        %1254 = vmatprep.subr.mxu0 0.0
        %1255 = vmatpush1.msra.mxu0 0.0
        %1256 = vmatprep.subr.mxu0 0.0
        %1257 = vmatpush1.msra.mxu0 0.0
        %1258 = vmatprep.subr.mxu0 0.0
        %1259 = vmatpush1.msra.mxu0 0.0
        %1260 = vmatprep.subr.mxu0 0.0
        %1261 = vmatpush1.msra.mxu0 0.0
        %1262 = vmatprep.subr.mxu0 0.0
        %1263 = vmatpush1.msra.mxu0 0.0
        %1264 = vmatprep.subr.mxu0 0.0
        %1265 = vmatpush1.msra.mxu0 0.0
        %1266 = vmatprep.subr.mxu0 0.0
        %1267 = vmatpush1.msra.mxu0 0.0
        %1268 = vmatprep.subr.mxu0 0.0
        %1269 = vmatpush1.msra.mxu0 0.0
        %1270 = vmatprep.mubr.f32.mxu0 0.0
        %1271 = vmatmul.mubr.f32.gmra.mrb[0].mxu0 %v1168
        %v1272 = vpop.f32.mrb[0].mxu0
        %v1273 = vadd.f32 %v1205, %v1272
        %v1274 = vpop.f32.mrb[0].mxu0
        %1275 = vmatprep.mubr.f32.mxu0 0.0
        %1276 = vmatmul.mubr.f32.gmra.mrb[0].mxu0 %v1169
        %v1277 = vpop.f32.mrb[0].mxu0
        %v1278 = vadd.f32 %v1205, %v1277
        %v1279 = vpop.f32.mrb[0].mxu0
        %1280 = vmatprep.mubr.f32.mxu0 0.0
        %1281 = vmatmul.mubr.f32.gmra.mrb[0].mxu0 %v1170
        %v1282 = vpop.f32.mrb[0].mxu0
        %v1283 = vadd.f32 %v1205, %v1282
        %v1284 = vpop.f32.mrb[0].mxu0
        %1285 = vmatprep.mubr.f32.mxu0 0.0
        %1286 = vmatmul.mubr.f32.gmra.mrb[0].mxu0 %v1171
        %v1287 = vpop.f32.mrb[0].mxu0
        %v1288 = vadd.f32 %v1205, %v1287
        %v1289 = vpop.f32.mrb[0].mxu0
        %1290 = vmatprep.mubr.f32.mxu0 0.0
        %1291 = vmatmul.mubr.f32.gmra.mrb[0].mxu0 %v1172
        %v1292 = vpop.f32.mrb[0].mxu0
        %v1293 = vadd.f32 %v1205, %v1292
        %v1294 = vpop.f32.mrb[0].mxu0
        %1295 = vmatprep.mubr.f32.mxu0 0.0
        %1296 = vmatmul.mubr.f32.gmra.mrb[0].mxu0 %v1173
        %v1297 = vpop.f32.mrb[0].mxu0
        %v1298 = vadd.f32 %v1205, %v1297
        %v1299 = vpop.f32.mrb[0].mxu0
        %1300 = vmatprep.mubr.f32.mxu0 0.0
        %1301 = vmatmul.mubr.f32.gmra.mrb[0].mxu0 %v1174
        %v1302 = vpop.f32.mrb[0].mxu0
        %v1303 = vadd.f32 %v1205, %v1302
        %v1304 = vpop.f32.mrb[0].mxu0
        %1305 = vmatprep.mubr.f32.mxu0 0.0
        %1306 = vmatmul.mubr.f32.gmra.mrb[0].mxu0 %v1175
        %v1307 = vpop.f32.mrb[0].mxu0
        %v1308 = vadd.f32 %v1205, %v1307
        %v1309 = vpop.f32.mrb[0].mxu0
        %1310 = vmatprep.mubr.f32.mxu0 0.0
        %1311 = vmatmul.mubr.f32.gmra.mrb[0].mxu0 %v1176
        %v1312 = vpop.f32.mrb[0].mxu0
        %v1313 = vadd.f32 %v1205, %v1312
        %v1314 = vpop.f32.mrb[0].mxu0
        %1315 = vmatprep.mubr.f32.mxu0 0.0
        %1316 = vmatmul.mubr.f32.gmra.mrb[0].mxu0 %v1177
        %v1317 = vpop.f32.mrb[0].mxu0
        %v1318 = vadd.f32 %v1205, %v1317
        %v1319 = vpop.f32.mrb[0].mxu0
        %1320 = vmatprep.mubr.f32.mxu0 0.0
        %1321 = vmatmul.mubr.f32.gmra.mrb[0].mxu0 %v1178
        %v1322 = vpop.f32.mrb[0].mxu0
        %v1323 = vadd.f32 %v1205, %v1322
        %v1324 = vpop.f32.mrb[0].mxu0
        %1325 = vmatprep.mubr.f32.mxu0 0.0
        %1326 = vmatmul.mubr.f32.gmra.mrb[0].mxu0 %v1179
        %v1327 = vpop.f32.mrb[0].mxu0
        %v1328 = vadd.f32 %v1205, %v1327
        %v1329 = vpop.f32.mrb[0].mxu0
        %1330 = vmatprep.mubr.f32.mxu0 0.0
        %1331 = vmatmul.mubr.f32.gmra.mrb[0].mxu0 %v1180
        %v1332 = vpop.f32.mrb[0].mxu0
        %v1333 = vadd.f32 %v1205, %v1332
        %v1334 = vpop.f32.mrb[0].mxu0
        %1335 = vmatprep.mubr.f32.mxu0 0.0
        %1336 = vmatmul.mubr.f32.gmra.mrb[0].mxu0 %v1181
        %v1337 = vpop.f32.mrb[0].mxu0
        %v1338 = vadd.f32 %v1205, %v1337
        %v1339 = vpop.f32.mrb[0].mxu0
        %1340 = vmatprep.mubr.f32.mxu0 0.0
        %1341 = vmatmul.mubr.f32.gmra.mrb[0].mxu0 %v1182
        %v1342 = vpop.f32.mrb[0].mxu0
        %v1343 = vadd.f32 %v1205, %v1342
        %v1344 = vpop.f32.mrb[0].mxu0
        %1345 = vmatprep.mubr.f32.mxu0 0.0
        %1346 = vmatmul.mubr.f32.gmra.mrb[0].mxu0 %v1183
        %v1347 = vpop.f32.mrb[0].mxu0
        %v1348 = vadd.f32 %v1205, %v1347
        %v1349 = vpop.f32.mrb[0].mxu0
        %1350 = vdwg.mxu0
        %v1351 = vtanh.pop %v1273
        %v1352 = vtanh.pop %v1278
        %v1353 = vtanh.pop %v1283
        %v1354 = vtanh.pop %v1288
        %v1355 = vtanh.pop %v1293
        %v1356 = vtanh.pop %v1298
        %v1357 = vtanh.pop %v1303
        %v1358 = vtanh.pop %v1308
        %v1359 = vtanh.pop %v1313
        %v1360 = vtanh.pop %v1318
        %v1361 = vtanh.pop %v1323
        %v1362 = vtanh.pop %v1328
        %v1363 = vtanh.pop %v1333
        %v1364 = vtanh.pop %v1338
        %v1365 = vtanh.pop %v1343
        %v1366 = vtanh.pop %v1348
        %s1367 = scalar_lea.vmem [#allocation2], 640
        %v1368 = vld [vmem:[%s1367] sm:$0xff]
        %v1369 = vld [vmem:[%s1367 + $0x8] sm:$0xff]
        %v1370 = vld [vmem:[%s1367 + $0x10] sm:$0xff]
        %v1371 = vld [vmem:[%s1367 + $0x18] sm:$0xff]
        %v1372 = vld [vmem:[%s1367 + $0x20] sm:$0xff]
        %v1373 = vld [vmem:[%s1367 + $0x28] sm:$0xff]
        %v1374 = vld [vmem:[%s1367 + $0x30] sm:$0xff]
        %v1375 = vld [vmem:[%s1367 + $0x38] sm:$0xff]
        %v1376 = vld [vmem:[%s1367 + $0x40] sm:$0xff]
        %v1377 = vld [vmem:[%s1367 + $0x48] sm:$0xff]
        %v1378 = vld [vmem:[%s1367 + $0x50] sm:$0xff]
        %v1379 = vld [vmem:[%s1367 + $0x58] sm:$0xff]
        %v1380 = vld [vmem:[%s1367 + $0x60] sm:$0xff]
        %v1381 = vld [vmem:[%s1367 + $0x68] sm:$0xff]
        %v1382 = vld [vmem:[%s1367 + $0x70] sm:$0xff]
        %v1383 = vld [vmem:[%s1367 + $0x78] sm:$0xff]
        %v1384 = vld [vmem:[%s3 + $0x6] sm:$0x1]
        %v1385 = vlaneseq
        %v1386 = vshrl.u32 %v1385, 7
        %v1387 = vsub.s32 0, %v1386
        %v1388 = vrot.slane %v1384, %v1387
        %1389 = vmatprep.subr.mxu0 0.0
        %1390 = vmatpush1.msra.mxu0 %v1368
        %1391 = vmatprep.subr.mxu0 0.0
        %1392 = vmatpush1.msra.mxu0 %v1369
        %1393 = vmatprep.subr.mxu0 0.0
        %1394 = vmatpush1.msra.mxu0 %v1370
        %1395 = vmatprep.subr.mxu0 0.0
        %1396 = vmatpush1.msra.mxu0 %v1371
        %1397 = vmatprep.subr.mxu0 0.0
        %1398 = vmatpush1.msra.mxu0 %v1372
        %1399 = vmatprep.subr.mxu0 0.0
        %1400 = vmatpush1.msra.mxu0 %v1373
        %1401 = vmatprep.subr.mxu0 0.0
        %1402 = vmatpush1.msra.mxu0 %v1374
        %1403 = vmatprep.subr.mxu0 0.0
        %1404 = vmatpush1.msra.mxu0 %v1375
        %1405 = vmatprep.subr.mxu0 0.0
        %1406 = vmatpush1.msra.mxu0 %v1376
        %1407 = vmatprep.subr.mxu0 0.0
        %1408 = vmatpush1.msra.mxu0 %v1377
        %1409 = vmatprep.subr.mxu0 0.0
        %1410 = vmatpush1.msra.mxu0 %v1378
        %1411 = vmatprep.subr.mxu0 0.0
        %1412 = vmatpush1.msra.mxu0 %v1379
        %1413 = vmatprep.subr.mxu0 0.0
        %1414 = vmatpush1.msra.mxu0 %v1380
        %1415 = vmatprep.subr.mxu0 0.0
        %1416 = vmatpush1.msra.mxu0 %v1381
        %1417 = vmatprep.subr.mxu0 0.0
        %1418 = vmatpush1.msra.mxu0 %v1382
        %1419 = vmatprep.subr.mxu0 0.0
        %1420 = vmatpush1.msra.mxu0 %v1383
        %1421 = vmatprep.subr.mxu0 0.0
        %1422 = vmatpush1.msra.mxu0 0.0
        %1423 = vmatprep.subr.mxu0 0.0
        %1424 = vmatpush1.msra.mxu0 0.0
        %1425 = vmatprep.subr.mxu0 0.0
        %1426 = vmatpush1.msra.mxu0 0.0
        %1427 = vmatprep.subr.mxu0 0.0
        %1428 = vmatpush1.msra.mxu0 0.0
        %1429 = vmatprep.subr.mxu0 0.0
        %1430 = vmatpush1.msra.mxu0 0.0
        %1431 = vmatprep.subr.mxu0 0.0
        %1432 = vmatpush1.msra.mxu0 0.0
        %1433 = vmatprep.subr.mxu0 0.0
        %1434 = vmatpush1.msra.mxu0 0.0
        %1435 = vmatprep.subr.mxu0 0.0
        %1436 = vmatpush1.msra.mxu0 0.0
        %1437 = vmatprep.subr.mxu0 0.0
        %1438 = vmatpush1.msra.mxu0 0.0
        %1439 = vmatprep.subr.mxu0 0.0
        %1440 = vmatpush1.msra.mxu0 0.0
        %1441 = vmatprep.subr.mxu0 0.0
        %1442 = vmatpush1.msra.mxu0 0.0
        %1443 = vmatprep.subr.mxu0 0.0
        %1444 = vmatpush1.msra.mxu0 0.0
        %1445 = vmatprep.subr.mxu0 0.0
        %1446 = vmatpush1.msra.mxu0 0.0
        %1447 = vmatprep.subr.mxu0 0.0
        %1448 = vmatpush1.msra.mxu0 0.0
        %1449 = vmatprep.subr.mxu0 0.0
        %1450 = vmatpush1.msra.mxu0 0.0
        %1451 = vmatprep.subr.mxu0 0.0
        %1452 = vmatpush1.msra.mxu0 0.0
        %1453 = vmatprep.mubr.f32.mxu0 0.0
        %1454 = vmatmul.mubr.f32.gmra.mrb[0].mxu0 %v1351
        %v1455 = vpop.f32.mrb[0].mxu0
        %v1456 = vadd.f32 %v1388, %v1455
        %v1457 = vpop.f32.mrb[0].mxu0
        %1458 = vmatprep.mubr.f32.mxu0 0.0
        %1459 = vmatmul.mubr.f32.gmra.mrb[0].mxu0 %v1352
        %v1460 = vpop.f32.mrb[0].mxu0
        %v1461 = vadd.f32 %v1388, %v1460
        %v1462 = vpop.f32.mrb[0].mxu0
        %1463 = vmatprep.mubr.f32.mxu0 0.0
        %1464 = vmatmul.mubr.f32.gmra.mrb[0].mxu0 %v1353
        %v1465 = vpop.f32.mrb[0].mxu0
        %v1466 = vadd.f32 %v1388, %v1465
        %v1467 = vpop.f32.mrb[0].mxu0
        %1468 = vmatprep.mubr.f32.mxu0 0.0
        %1469 = vmatmul.mubr.f32.gmra.mrb[0].mxu0 %v1354
        %v1470 = vpop.f32.mrb[0].mxu0
        %v1471 = vadd.f32 %v1388, %v1470
        %v1472 = vpop.f32.mrb[0].mxu0
        %1473 = vmatprep.mubr.f32.mxu0 0.0
        %1474 = vmatmul.mubr.f32.gmra.mrb[0].mxu0 %v1355
        %v1475 = vpop.f32.mrb[0].mxu0
        %v1476 = vadd.f32 %v1388, %v1475
        %v1477 = vpop.f32.mrb[0].mxu0
        %1478 = vmatprep.mubr.f32.mxu0 0.0
        %1479 = vmatmul.mubr.f32.gmra.mrb[0].mxu0 %v1356
        %v1480 = vpop.f32.mrb[0].mxu0
        %v1481 = vadd.f32 %v1388, %v1480
        %v1482 = vpop.f32.mrb[0].mxu0
        %1483 = vmatprep.mubr.f32.mxu0 0.0
        %1484 = vmatmul.mubr.f32.gmra.mrb[0].mxu0 %v1357
        %v1485 = vpop.f32.mrb[0].mxu0
        %v1486 = vadd.f32 %v1388, %v1485
        %v1487 = vpop.f32.mrb[0].mxu0
        %1488 = vmatprep.mubr.f32.mxu0 0.0
        %1489 = vmatmul.mubr.f32.gmra.mrb[0].mxu0 %v1358
        %v1490 = vpop.f32.mrb[0].mxu0
        %v1491 = vadd.f32 %v1388, %v1490
        %v1492 = vpop.f32.mrb[0].mxu0
        %1493 = vmatprep.mubr.f32.mxu0 0.0
        %1494 = vmatmul.mubr.f32.gmra.mrb[0].mxu0 %v1359
        %v1495 = vpop.f32.mrb[0].mxu0
        %v1496 = vadd.f32 %v1388, %v1495
        %v1497 = vpop.f32.mrb[0].mxu0
        %1498 = vmatprep.mubr.f32.mxu0 0.0
        %1499 = vmatmul.mubr.f32.gmra.mrb[0].mxu0 %v1360
        %v1500 = vpop.f32.mrb[0].mxu0
        %v1501 = vadd.f32 %v1388, %v1500
        %v1502 = vpop.f32.mrb[0].mxu0
        %1503 = vmatprep.mubr.f32.mxu0 0.0
        %1504 = vmatmul.mubr.f32.gmra.mrb[0].mxu0 %v1361
        %v1505 = vpop.f32.mrb[0].mxu0
        %v1506 = vadd.f32 %v1388, %v1505
        %v1507 = vpop.f32.mrb[0].mxu0
        %1508 = vmatprep.mubr.f32.mxu0 0.0
        %1509 = vmatmul.mubr.f32.gmra.mrb[0].mxu0 %v1362
        %v1510 = vpop.f32.mrb[0].mxu0
        %v1511 = vadd.f32 %v1388, %v1510
        %v1512 = vpop.f32.mrb[0].mxu0
        %1513 = vmatprep.mubr.f32.mxu0 0.0
        %1514 = vmatmul.mubr.f32.gmra.mrb[0].mxu0 %v1363
        %v1515 = vpop.f32.mrb[0].mxu0
        %v1516 = vadd.f32 %v1388, %v1515
        %v1517 = vpop.f32.mrb[0].mxu0
        %1518 = vmatprep.mubr.f32.mxu0 0.0
        %1519 = vmatmul.mubr.f32.gmra.mrb[0].mxu0 %v1364
        %v1520 = vpop.f32.mrb[0].mxu0
        %v1521 = vadd.f32 %v1388, %v1520
        %v1522 = vpop.f32.mrb[0].mxu0
        %1523 = vmatprep.mubr.f32.mxu0 0.0
        %1524 = vmatmul.mubr.f32.gmra.mrb[0].mxu0 %v1365
        %v1525 = vpop.f32.mrb[0].mxu0
        %v1526 = vadd.f32 %v1388, %v1525
        %v1527 = vpop.f32.mrb[0].mxu0
        %1528 = vmatprep.mubr.f32.mxu0 0.0
        %1529 = vmatmul.mubr.f32.gmra.mrb[0].mxu0 %v1366
        %v1530 = vpop.f32.mrb[0].mxu0
        %v1531 = vadd.f32 %v1388, %v1530
        %v1532 = vpop.f32.mrb[0].mxu0
        %1533 = vdwg.mxu0
        %1534 = vst [vmem:[%s206] sm:$0xff] %v1456
        %1535 = vst [vmem:[%s206 + $0x8] sm:$0xff] %v1461
        %1536 = vst [vmem:[%s206 + $0x10] sm:$0xff] %v1466
        %1537 = vst [vmem:[%s206 + $0x18] sm:$0xff] %v1471
        %1538 = vst [vmem:[%s206 + $0x20] sm:$0xff] %v1476
        %1539 = vst [vmem:[%s206 + $0x28] sm:$0xff] %v1481
        %1540 = vst [vmem:[%s206 + $0x30] sm:$0xff] %v1486
        %1541 = vst [vmem:[%s206 + $0x38] sm:$0xff] %v1491
        %1542 = vst [vmem:[%s206 + $0x40] sm:$0xff] %v1496
        %1543 = vst [vmem:[%s206 + $0x48] sm:$0xff] %v1501
        %1544 = vst [vmem:[%s206 + $0x50] sm:$0xff] %v1506
        %1545 = vst [vmem:[%s206 + $0x58] sm:$0xff] %v1511
        %1546 = vst [vmem:[%s206 + $0x60] sm:$0xff] %v1516
        %1547 = vst [vmem:[%s206 + $0x68] sm:$0xff] %v1521
        %1548 = vst [vmem:[%s206 + $0x70] sm:$0xff] %v1526
        %1549 = vst [vmem:[%s206 + $0x78] sm:$0xff] %v1531
        %s1550 = sand.u32 %s116, 1
        %s1551 = scalar_lea.sflag [#allocation4], %s1550
        %s1552 = sand.u32 %s116, 1
        %s1553 = smul.addr %s1552, 128
        %s1554 = scalar_lea.vmem [#allocation5], %s1553
        // Predicated region
        $region41: #{tpu_custom_call.1} parent=35 // pred_check
          %p1555 = pneg %p126
        $region42: #{tpu_custom_call.1} parent=35 // pred_check_branch
          %1557 = sbr.rel (%p1555) target = $region44
        $region43: #{tpu_custom_call.1} parent=35 // pred_region
          %s1558 = smul.u32 16, %s19
          %s1560 = ssub.s32 2048, 2048
          %1561 = vsyncadd %s1551, %s1560
          %s1562 = smul.addr %s1558, 128
          %s1563 = scalar_lea.hbm %s4, %s1562
          %s1564 = sshll.u32 %s1554, 4
          %s1565 = int_to_ptr.vmem [resolvable:$true] %s1564
          %1570 = dma.vmem_to_hbm [thread:$0]  %s1565, 2048, %s1563, %s1551, 128, 128, 8
        $region44: #{tpu_custom_call.1} parent=35 // pred_fallthru
          _
      $region36: #{tpu_custom_call.1} parent=5 // pred_fallthru
        _
      %p1571 = scmp.le.s32.totalorder 2, %s14
      // Predicated region
      $region45: #{tpu_custom_call.1} parent=5 // pred_check
        %p1572 = pneg %p1571
      $region46: #{tpu_custom_call.1} parent=5 // pred_check_branch
        %1574 = sbr.rel (%p1572) target = $region48
      $region47: #{tpu_custom_call.1} parent=5 // pred_region
        %s1575 = ssub.s32 %s14, 2
        // Predicated region
        $region49: #{tpu_custom_call.1} parent=47 // pred_check
          %p1576 = pneg %p132
        $region50: #{tpu_custom_call.1} parent=47 // pred_check_branch
          %1578 = sbr.rel (%p1576) target = $region52
        $region51: #{tpu_custom_call.1} parent=47 // pred_region
          %s1579 = sand.u32 %s117, 1
          %s1580 = scalar_lea.sflag [#allocation4], %s1579
          %s1581 = sand.u32 %s117, 1
          %s1582 = smul.addr %s1581, 128
          %s1583 = scalar_lea.vmem [#allocation5], %s1582
          %1584 = dma.done %s1580, 2048
        $region52: #{tpu_custom_call.1} parent=47 // pred_fallthru
          _
      $region48: #{tpu_custom_call.1} parent=5 // pred_fallthru
        _
    $region6: #{tpu_custom_call.1} parent=1 // loop_footer
      %s18 = sadd.s32 1, %s14
    $region7: #{tpu_custom_call.1} parent=1 // loop_footer_branch
      %13 = sbr.rel target = $region3
    $region8: #{tpu_custom_call.1} parent=1 // loop_exit
      _
    %1585 = vsyncpa [#allocation3], 1
    %s1586 = scalar_lea.sflag [#allocation3], 1
    %1587 = vsyncpa %s1586, 1
    %1588 = vsyncpa [#allocation4], 1
    %s1589 = scalar_lea.sflag [#allocation4], 1
    %1590 = vsyncpa %s1589, 1

</llo_original>
